<compile_context>
chip_gen: v7x
topology: tpu7x:2x2x1
jax: 0.10.0
libtpu: 0.0.40
codegen_flags: <defaults>
</compile_context>

<pallas_src>
import jax
import jax.numpy as jnp
import numpy as np
from jax.experimental import pallas as pl
from jax.experimental.pallas import tpu as pltpu

# ----------------------------- configuration ------------------------------
BATCH = 2
SEQ = 16
DIM = 64
HEADS = 2
DIM_HEAD = 32
DIM_INNER = HEADS * DIM_HEAD          # 64

ATTN_SCALE = DIM_HEAD ** 0.5          # nGPT passes scale=sqrt(dim_head) to SDPA
S_QK_INIT = 1.0
S_QK_SCALE = DIM ** (-1.0)            # default s_qk_scale
EPS = 1e-12                           # F.normalize eps
NEG_INF = -1e30


def l2norm(t, axis=-1, eps=EPS):
    n = jnp.sqrt(jnp.sum(t * t, axis=axis, keepdims=True))
    return t / jnp.maximum(n, eps)


# ----------------------- fused forward kernel (1 step) ---------------------
def _fused_attention_kernel(x_ref, wqkv_ref, wo_ref, scale_ref, o_ref):
    x = x_ref[...]                                            # (B*N, DIM) f32

    # Single fused QKV projection on the MXU: bf16 operands, f32 accumulate.
    qkv = jnp.dot(x.astype(jnp.bfloat16), wqkv_ref[...],
                  preferred_element_type=jnp.float32)         # (B*N, 3*DIM_INNER)

    sc = scale_ref[...]                 # (1, DIM_INNER): qk_scale * attn_scale

    # Causal mask computed once, shared by every (batch, head) pair.
    row = jax.lax.broadcasted_iota(jnp.int32, (SEQ, SEQ), 0)
    col = jax.lax.broadcasted_iota(jnp.int32, (SEQ, SEQ), 1)
    causal = row >= col

    for b in range(BATCH):                                    # statically unrolled
        r0 = b * SEQ                                          # sublane-aligned rows
        y = jnp.zeros((SEQ, DIM), jnp.float32)
        for h in range(HEADS):
            # column layout: [q_h0 k_h0 q_h1 k_h1 | v_h0 v_h1]
            q_lo = (2 * h) * DIM_HEAD
            k_lo = (2 * h + 1) * DIM_HEAD
            v_lo = 2 * DIM_INNER + h * DIM_HEAD

            q = qkv[r0:r0 + SEQ, q_lo:q_lo + DIM_HEAD]        # (N, D) f32
            k = qkv[r0:r0 + SEQ, k_lo:k_lo + DIM_HEAD]
            v = qkv[r0:r0 + SEQ, v_lo:v_lo + DIM_HEAD]

            # l2norm over head dim (EUP rsqrt):
            #   t / max(||t||, eps) == t * rsqrt(max(||t||^2, eps^2))
            q = q * jax.lax.rsqrt(
                jnp.maximum(jnp.sum(q * q, -1, keepdims=True), EPS * EPS))
            k = k * jax.lax.rsqrt(
                jnp.maximum(jnp.sum(k * k, -1, keepdims=True), EPS * EPS))

            # per-head qk scale with sqrt(dim_head) already folded in host-side
            q = q * sc[:, h * DIM_HEAD:(h + 1) * DIM_HEAD]

            # scores: contract over head dim (no extra * ATTN_SCALE here)
            s = jax.lax.dot_general(q, k, (((1,), (1,)), ((), ())),
                                    preferred_element_type=jnp.float32)
            s = jnp.where(causal, s, NEG_INF)

            m = jnp.max(s, axis=-1, keepdims=True)
            p = jnp.exp(s - m)                                # EUP
            inv = pl.reciprocal(jnp.sum(p, -1, keepdims=True), approx=True)
            oh = jnp.dot(p, v, preferred_element_type=jnp.float32) * inv

            # Per-head output-projection accumulation: no head concat, no
            # merged materialization.  bf16 operands / f32 accumulate.
            y = y + jnp.dot(oh.astype(jnp.bfloat16),
                            wo_ref[h * DIM_HEAD:(h + 1) * DIM_HEAD, :],
                            preferred_element_type=jnp.float32)

        o_ref[r0:r0 + SEQ, :] = y.astype(o_ref.dtype)


# ------------------------------ full forward -------------------------------
def init_params(key):
    k1, k2, k3, k4 = jax.random.split(key, 4)
    # nn.Linear weights: (out_features, in_features)
    return {
        "wq": jax.random.normal(k1, (DIM_INNER, DIM), jnp.float32) * 0.02,
        "wk": jax.random.normal(k2, (DIM_INNER, DIM), jnp.float32) * 0.02,
        "wv": jax.random.normal(k3, (DIM_INNER, DIM), jnp.float32) * 0.02,
        "wo": jax.random.normal(k4, (DIM, DIM_INNER), jnp.float32) * 0.02,
        # Scale param: ones(dim_inner) * s_qk_scale (as in Scale.__init__)
        "qk_scale": jnp.ones((DIM_INNER,), jnp.float32) * S_QK_SCALE,
    }


def attention_forward(x, params):
    B, N, _ = x.shape

    # NormLinear weight parametrization (host-side parameter prep).
    wq = l2norm(params["wq"], axis=-1)        # norm_dim_in=True  -> rows normalized
    wk = l2norm(params["wk"], axis=-1)
    wv = l2norm(params["wv"], axis=-1)
    wo = l2norm(params["wo"], axis=0)         # norm_dim_in=False -> cols normalized

    # Fused QKV weight with vreg-friendly column layout:
    # [q_h0 k_h0 q_h1 k_h1 | v_h0 v_h1]  (each head's q/k inside one 128-lane
    # vreg; v starts at the 128-lane boundary).  bf16 halves weight DMA bytes.
    wq_t, wk_t, wv_t = wq.T, wk.T, wv.T       # (DIM, DIM_INNER)
    cols = []
    for h in range(HEADS):
        cols.append(wq_t[:, h * DIM_HEAD:(h + 1) * DIM_HEAD])
        cols.append(wk_t[:, h * DIM_HEAD:(h + 1) * DIM_HEAD])
    cols.append(wv_t)
    wqkv_t = jnp.concatenate(cols, axis=1).astype(jnp.bfloat16)  # (DIM, 3*DIM_INNER)
    wo_t = wo.T.astype(jnp.bfloat16)                             # (DIM_INNER, DIM)

    # Scale.forward() == param * (init / scale); fold the multiplicative
    # sqrt(dim_head) SDPA scale in here (it commutes into q).
    qk_scale = (params["qk_scale"] * (S_QK_INIT / S_QK_SCALE) * ATTN_SCALE)
    qk_scale = qk_scale.reshape(1, DIM_INNER).astype(jnp.float32)

    x_flat = x.reshape(B * N, DIM)            # fold batch*seq into the M tile

    flops = (2 * B * N * DIM * 3 * DIM_INNER                       # QKV proj
             + B * HEADS * (2 * 2 * N * N * DIM_HEAD               # scores + P@V
                            + 2 * N * DIM_HEAD * DIM))             # out proj
    transcendentals = B * HEADS * (N * N + 3 * N)                  # exp + rsqrt/recip
    bytes_accessed = (x_flat.size * 4 + wqkv_t.size * 2 + wo_t.size * 2
                      + qk_scale.size * 4 + B * N * DIM * 4)

    y_flat = pl.pallas_call(
        _fused_attention_kernel,
        out_shape=jax.ShapeDtypeStruct((B * N, DIM), jnp.float32),
        in_specs=[pl.BlockSpec(memory_space=pltpu.MemorySpace.VMEM)] * 4,
        out_specs=pl.BlockSpec(memory_space=pltpu.MemorySpace.VMEM),
        cost_estimate=pl.CostEstimate(flops=flops,
                                      transcendentals=transcendentals,
                                      bytes_accessed=bytes_accessed),
    )(x_flat, wqkv_t, wo_t, qk_scale)

    return y_flat.reshape(B, N, DIM)


# ----------------------------- pure-JAX reference --------------------------
def attention_reference(x, params):
    B, N, _ = x.shape
    wq = l2norm(params["wq"], -1)
    wk = l2norm(params["wk"], -1)
    wv = l2norm(params["wv"], -1)
    wo = l2norm(params["wo"], 0)

    q = x @ wq.T
    k = x @ wk.T
    v = x @ wv.T

    def split(t):
        return t.reshape(B, N, HEADS, DIM_HEAD).transpose(0, 2, 1, 3)

    q, k, v = map(split, (q, k, v))
    q, k = l2norm(q, -1), l2norm(k, -1)

    scale = (params["qk_scale"] * (S_QK_INIT / S_QK_SCALE)).reshape(HEADS, 1, DIM_HEAD)
    q = q * scale

    s = jnp.einsum("bhqd,bhkd->bhqk", q, k) * ATTN_SCALE
    mask = jnp.tril(jnp.ones((N, N), bool))
    s = jnp.where(mask, s, NEG_INF)
    p = jax.nn.softmax(s, axis=-1)
    out = jnp.einsum("bhqk,bhkd->bhqd", p, v)
    merged = out.transpose(0, 2, 1, 3).reshape(B, N, DIM_INNER)
    return merged @ wo.T


# --------------------------------- main -------------------------------------
if __name__ == "__main__":
    key = jax.random.PRNGKey(0)
    kx, kp = jax.random.split(key)
    x = jax.random.normal(kx, (BATCH, SEQ, DIM), jnp.float32)
    params = init_params(kp)

    fwd = jax.jit(attention_forward)
    out = jax.block_until_ready(fwd(x, params))

    ref = jax.block_until_ready(attention_reference(x, params))
    # Tolerance accounts for bf16 MXU operands in the two projection matmuls
    # and the approx EUP reciprocal in the softmax denominator.
    np.testing.assert_allclose(np.asarray(out), np.asarray(ref), rtol=2e-2, atol=2e-2)

    print("KERNEL_OK")
</pallas_src>

<mosaic_0001>
module attributes {stable_mosaic.version = 11 : i64} {
  func.func @_fused_attention_kernel(%arg0: memref<32x64xf32, #tpu.memory_space<vmem>>, %arg1: memref<64x192xbf16, #tpu.memory_space<vmem>>, %arg2: memref<64x64xbf16, #tpu.memory_space<vmem>>, %arg3: memref<1x64xf32, #tpu.memory_space<vmem>>, %arg4: memref<32x64xf32, #tpu.memory_space<vmem>>) attributes {dimension_semantics = [], scalar_prefetch = 0 : i64, scratch_operands = 0 : i64, tpu.core_type = #tpu.core_type<tc>} {
    %c0 = arith.constant 0 : index
    %c0_0 = arith.constant 0 : index
    %0 = vector.load %arg0[%c0, %c0_0] : memref<32x64xf32, #tpu.memory_space<vmem>>, vector<32x64xf32>
    %1 = arith.truncf %0 : vector<32x64xf32> to vector<32x64xbf16>
    %c0_1 = arith.constant 0 : index
    %c0_2 = arith.constant 0 : index
    %2 = vector.load %arg1[%c0_1, %c0_2] : memref<64x192xbf16, #tpu.memory_space<vmem>>, vector<64x192xbf16>
    %cst = arith.constant dense<0.000000e+00> : vector<32x192xf32>
    %3 = tpu.matmul %1, %2, %cst {dimension_numbers = #tpu.dot_dimension_numbers<[1], [0], [0], [1], [0, 0, 1, 1], [], []>} : vector<32x64xbf16>, vector<64x192xbf16>, vector<32x192xf32> -> vector<32x192xf32>
    %c0_3 = arith.constant 0 : index
    %c0_4 = arith.constant 0 : index
    %4 = vector.load %arg3[%c0_3, %c0_4] : memref<1x64xf32, #tpu.memory_space<vmem>>, vector<1x64xf32>
    %5 = tpu.iota {dimensions = array<i32: 0>} : vector<16x16xi32>
    %6 = tpu.iota {dimensions = array<i32: 1>} : vector<16x16xi32>
    %7 = arith.cmpi sge, %5, %6 : vector<16x16xi32>
    %cst_5 = arith.constant 0.000000e+00 : f32
    %8 = vector.broadcast %cst_5 : f32 to vector<16x64xf32>
    %9 = vector.extract_strided_slice %3 {offsets = [0, 0], sizes = [16, 32], strides = [1, 1]} : vector<32x192xf32> to vector<16x32xf32>
    %10 = vector.extract_strided_slice %3 {offsets = [0, 32], sizes = [16, 32], strides = [1, 1]} : vector<32x192xf32> to vector<16x32xf32>
    %11 = vector.extract_strided_slice %3 {offsets = [0, 128], sizes = [16, 32], strides = [1, 1]} : vector<32x192xf32> to vector<16x32xf32>
    %12 = arith.mulf %9, %9 : vector<16x32xf32>
    %cst_6 = arith.constant dense<0.000000e+00> : vector<16xf32>
    %13 = vector.multi_reduction <add>, %12, %cst_6 [1] : vector<16x32xf32> to vector<16xf32>
    %14 = vector.shape_cast %13 : vector<16xf32> to vector<16x1xf32>
    %cst_7 = arith.constant 1.000000e-24 : f32
    %15 = vector.broadcast %cst_7 : f32 to vector<16x1xf32>
    %16 = arith.maximumf %14, %15 : vector<16x1xf32>
    %17 = math.rsqrt %16 : vector<16x1xf32>
    %18 = vector.broadcast %17 : vector<16x1xf32> to vector<16x32xf32>
    %19 = arith.mulf %9, %18 : vector<16x32xf32>
    %20 = arith.mulf %10, %10 : vector<16x32xf32>
    %cst_8 = arith.constant dense<0.000000e+00> : vector<16xf32>
    %21 = vector.multi_reduction <add>, %20, %cst_8 [1] : vector<16x32xf32> to vector<16xf32>
    %22 = vector.shape_cast %21 : vector<16xf32> to vector<16x1xf32>
    %cst_9 = arith.constant 1.000000e-24 : f32
    %23 = vector.broadcast %cst_9 : f32 to vector<16x1xf32>
    %24 = arith.maximumf %22, %23 : vector<16x1xf32>
    %25 = math.rsqrt %24 : vector<16x1xf32>
    %26 = vector.broadcast %25 : vector<16x1xf32> to vector<16x32xf32>
    %27 = arith.mulf %10, %26 : vector<16x32xf32>
    %28 = vector.extract_strided_slice %4 {offsets = [0, 0], sizes = [1, 32], strides = [1, 1]} : vector<1x64xf32> to vector<1x32xf32>
    %29 = vector.broadcast %28 : vector<1x32xf32> to vector<16x32xf32>
    %30 = arith.mulf %19, %29 : vector<16x32xf32>
    %cst_10 = arith.constant dense<0.000000e+00> : vector<16x16xf32>
    %31 = tpu.matmul %30, %27, %cst_10 {dimension_numbers = #tpu.dot_dimension_numbers<[1], [1], [0], [0], [0, 0, 1, 0], [], []>} : vector<16x32xf32>, vector<16x32xf32>, vector<16x16xf32> -> vector<16x16xf32>
    %cst_11 = arith.constant -1.000000e+30 : f32
    %32 = vector.broadcast %cst_11 : f32 to vector<16x16xf32>
    %33 = arith.select %7, %31, %32 : vector<16x16xi1>, vector<16x16xf32>
    %cst_12 = arith.constant dense<0xFF800000> : vector<16xf32>
    %34 = vector.multi_reduction <maximumf>, %33, %cst_12 [1] : vector<16x16xf32> to vector<16xf32>
    %35 = vector.shape_cast %34 : vector<16xf32> to vector<16x1xf32>
    %36 = vector.broadcast %35 : vector<16x1xf32> to vector<16x16xf32>
    %37 = arith.subf %33, %36 : vector<16x16xf32>
    %38 = math.exp %37 : vector<16x16xf32>
    %cst_13 = arith.constant dense<0.000000e+00> : vector<16xf32>
    %39 = vector.multi_reduction <add>, %38, %cst_13 [1] : vector<16x16xf32> to vector<16xf32>
    %40 = vector.shape_cast %39 : vector<16xf32> to vector<16x1xf32>
    %41 = tpu.reciprocal %40 {approx = true} : vector<16x1xf32> -> vector<16x1xf32>
    %cst_14 = arith.constant dense<0.000000e+00> : vector<16x32xf32>
    %42 = tpu.matmul %38, %11, %cst_14 {dimension_numbers = #tpu.dot_dimension_numbers<[1], [0], [0], [1], [0, 0, 1, 1], [], []>} : vector<16x16xf32>, vector<16x32xf32>, vector<16x32xf32> -> vector<16x32xf32>
    %43 = vector.broadcast %41 : vector<16x1xf32> to vector<16x32xf32>
    %44 = arith.mulf %42, %43 : vector<16x32xf32>
    %45 = arith.truncf %44 : vector<16x32xf32> to vector<16x32xbf16>
    %c0_15 = arith.constant 0 : index
    %c0_16 = arith.constant 0 : index
    %46 = vector.load %arg2[%c0_15, %c0_16] : memref<64x64xbf16, #tpu.memory_space<vmem>>, vector<32x64xbf16>
    %cst_17 = arith.constant dense<0.000000e+00> : vector<16x64xf32>
    %47 = tpu.matmul %45, %46, %cst_17 {dimension_numbers = #tpu.dot_dimension_numbers<[1], [0], [0], [1], [0, 0, 1, 1], [], []>} : vector<16x32xbf16>, vector<32x64xbf16>, vector<16x64xf32> -> vector<16x64xf32>
    %48 = arith.addf %8, %47 : vector<16x64xf32>
    %49 = vector.extract_strided_slice %3 {offsets = [0, 64], sizes = [16, 32], strides = [1, 1]} : vector<32x192xf32> to vector<16x32xf32>
    %50 = vector.extract_strided_slice %3 {offsets = [0, 96], sizes = [16, 32], strides = [1, 1]} : vector<32x192xf32> to vector<16x32xf32>
    %51 = vector.extract_strided_slice %3 {offsets = [0, 160], sizes = [16, 32], strides = [1, 1]} : vector<32x192xf32> to vector<16x32xf32>
    %52 = arith.mulf %49, %49 : vector<16x32xf32>
    %cst_18 = arith.constant dense<0.000000e+00> : vector<16xf32>
    %53 = vector.multi_reduction <add>, %52, %cst_18 [1] : vector<16x32xf32> to vector<16xf32>
    %54 = vector.shape_cast %53 : vector<16xf32> to vector<16x1xf32>
    %cst_19 = arith.constant 1.000000e-24 : f32
    %55 = vector.broadcast %cst_19 : f32 to vector<16x1xf32>
    %56 = arith.maximumf %54, %55 : vector<16x1xf32>
    %57 = math.rsqrt %56 : vector<16x1xf32>
    %58 = vector.broadcast %57 : vector<16x1xf32> to vector<16x32xf32>
    %59 = arith.mulf %49, %58 : vector<16x32xf32>
    %60 = arith.mulf %50, %50 : vector<16x32xf32>
    %cst_20 = arith.constant dense<0.000000e+00> : vector<16xf32>
    %61 = vector.multi_reduction <add>, %60, %cst_20 [1] : vector<16x32xf32> to vector<16xf32>
    %62 = vector.shape_cast %61 : vector<16xf32> to vector<16x1xf32>
    %cst_21 = arith.constant 1.000000e-24 : f32
    %63 = vector.broadcast %cst_21 : f32 to vector<16x1xf32>
    %64 = arith.maximumf %62, %63 : vector<16x1xf32>
    %65 = math.rsqrt %64 : vector<16x1xf32>
    %66 = vector.broadcast %65 : vector<16x1xf32> to vector<16x32xf32>
    %67 = arith.mulf %50, %66 : vector<16x32xf32>
    %68 = vector.extract_strided_slice %4 {offsets = [0, 32], sizes = [1, 32], strides = [1, 1]} : vector<1x64xf32> to vector<1x32xf32>
    %69 = vector.broadcast %68 : vector<1x32xf32> to vector<16x32xf32>
    %70 = arith.mulf %59, %69 : vector<16x32xf32>
    %cst_22 = arith.constant dense<0.000000e+00> : vector<16x16xf32>
    %71 = tpu.matmul %70, %67, %cst_22 {dimension_numbers = #tpu.dot_dimension_numbers<[1], [1], [0], [0], [0, 0, 1, 0], [], []>} : vector<16x32xf32>, vector<16x32xf32>, vector<16x16xf32> -> vector<16x16xf32>
    %cst_23 = arith.constant -1.000000e+30 : f32
    %72 = vector.broadcast %cst_23 : f32 to vector<16x16xf32>
    %73 = arith.select %7, %71, %72 : vector<16x16xi1>, vector<16x16xf32>
    %cst_24 = arith.constant dense<0xFF800000> : vector<16xf32>
    %74 = vector.multi_reduction <maximumf>, %73, %cst_24 [1] : vector<16x16xf32> to vector<16xf32>
    %75 = vector.shape_cast %74 : vector<16xf32> to vector<16x1xf32>
    %76 = vector.broadcast %75 : vector<16x1xf32> to vector<16x16xf32>
    %77 = arith.subf %73, %76 : vector<16x16xf32>
    %78 = math.exp %77 : vector<16x16xf32>
    %cst_25 = arith.constant dense<0.000000e+00> : vector<16xf32>
    %79 = vector.multi_reduction <add>, %78, %cst_25 [1] : vector<16x16xf32> to vector<16xf32>
    %80 = vector.shape_cast %79 : vector<16xf32> to vector<16x1xf32>
    %81 = tpu.reciprocal %80 {approx = true} : vector<16x1xf32> -> vector<16x1xf32>
    %cst_26 = arith.constant dense<0.000000e+00> : vector<16x32xf32>
    %82 = tpu.matmul %78, %51, %cst_26 {dimension_numbers = #tpu.dot_dimension_numbers<[1], [0], [0], [1], [0, 0, 1, 1], [], []>} : vector<16x16xf32>, vector<16x32xf32>, vector<16x32xf32> -> vector<16x32xf32>
    %83 = vector.broadcast %81 : vector<16x1xf32> to vector<16x32xf32>
    %84 = arith.mulf %82, %83 : vector<16x32xf32>
    %85 = arith.truncf %84 : vector<16x32xf32> to vector<16x32xbf16>
    %c32 = arith.constant 32 : index
    %c0_27 = arith.constant 0 : index
    %86 = vector.load %arg2[%c32, %c0_27] : memref<64x64xbf16, #tpu.memory_space<vmem>>, vector<32x64xbf16>
    %cst_28 = arith.constant dense<0.000000e+00> : vector<16x64xf32>
    %87 = tpu.matmul %85, %86, %cst_28 {dimension_numbers = #tpu.dot_dimension_numbers<[1], [0], [0], [1], [0, 0, 1, 1], [], []>} : vector<16x32xbf16>, vector<32x64xbf16>, vector<16x64xf32> -> vector<16x64xf32>
    %88 = arith.addf %48, %87 : vector<16x64xf32>
    %c0_29 = arith.constant 0 : index
    %c0_30 = arith.constant 0 : index
    %89 = vector.load %arg4[%c0_29, %c0_30] : memref<32x64xf32, #tpu.memory_space<vmem>>, vector<16x64xf32>
    tpu.vector_store %arg4[%c0_29, %c0_30], %88 {strides = array<i32>} : memref<32x64xf32, #tpu.memory_space<vmem>>, vector<16x64xf32>,
    %cst_31 = arith.constant 0.000000e+00 : f32
    %90 = vector.broadcast %cst_31 : f32 to vector<16x64xf32>
    %91 = vector.extract_strided_slice %3 {offsets = [16, 0], sizes = [16, 32], strides = [1, 1]} : vector<32x192xf32> to vector<16x32xf32>
    %92 = vector.extract_strided_slice %3 {offsets = [16, 32], sizes = [16, 32], strides = [1, 1]} : vector<32x192xf32> to vector<16x32xf32>
    %93 = vector.extract_strided_slice %3 {offsets = [16, 128], sizes = [16, 32], strides = [1, 1]} : vector<32x192xf32> to vector<16x32xf32>
    %94 = arith.mulf %91, %91 : vector<16x32xf32>
    %cst_32 = arith.constant dense<0.000000e+00> : vector<16xf32>
    %95 = vector.multi_reduction <add>, %94, %cst_32 [1] : vector<16x32xf32> to vector<16xf32>
    %96 = vector.shape_cast %95 : vector<16xf32> to vector<16x1xf32>
    %cst_33 = arith.constant 1.000000e-24 : f32
    %97 = vector.broadcast %cst_33 : f32 to vector<16x1xf32>
    %98 = arith.maximumf %96, %97 : vector<16x1xf32>
    %99 = math.rsqrt %98 : vector<16x1xf32>
    %100 = vector.broadcast %99 : vector<16x1xf32> to vector<16x32xf32>
    %101 = arith.mulf %91, %100 : vector<16x32xf32>
    %102 = arith.mulf %92, %92 : vector<16x32xf32>
    %cst_34 = arith.constant dense<0.000000e+00> : vector<16xf32>
    %103 = vector.multi_reduction <add>, %102, %cst_34 [1] : vector<16x32xf32> to vector<16xf32>
    %104 = vector.shape_cast %103 : vector<16xf32> to vector<16x1xf32>
    %cst_35 = arith.constant 1.000000e-24 : f32
    %105 = vector.broadcast %cst_35 : f32 to vector<16x1xf32>
    %106 = arith.maximumf %104, %105 : vector<16x1xf32>
    %107 = math.rsqrt %106 : vector<16x1xf32>
    %108 = vector.broadcast %107 : vector<16x1xf32> to vector<16x32xf32>
    %109 = arith.mulf %92, %108 : vector<16x32xf32>
    %110 = vector.extract_strided_slice %4 {offsets = [0, 0], sizes = [1, 32], strides = [1, 1]} : vector<1x64xf32> to vector<1x32xf32>
    %111 = vector.broadcast %110 : vector<1x32xf32> to vector<16x32xf32>
    %112 = arith.mulf %101, %111 : vector<16x32xf32>
    %cst_36 = arith.constant dense<0.000000e+00> : vector<16x16xf32>
    %113 = tpu.matmul %112, %109, %cst_36 {dimension_numbers = #tpu.dot_dimension_numbers<[1], [1], [0], [0], [0, 0, 1, 0], [], []>} : vector<16x32xf32>, vector<16x32xf32>, vector<16x16xf32> -> vector<16x16xf32>
    %cst_37 = arith.constant -1.000000e+30 : f32
    %114 = vector.broadcast %cst_37 : f32 to vector<16x16xf32>
    %115 = arith.select %7, %113, %114 : vector<16x16xi1>, vector<16x16xf32>
    %cst_38 = arith.constant dense<0xFF800000> : vector<16xf32>
    %116 = vector.multi_reduction <maximumf>, %115, %cst_38 [1] : vector<16x16xf32> to vector<16xf32>
    %117 = vector.shape_cast %116 : vector<16xf32> to vector<16x1xf32>
    %118 = vector.broadcast %117 : vector<16x1xf32> to vector<16x16xf32>
    %119 = arith.subf %115, %118 : vector<16x16xf32>
    %120 = math.exp %119 : vector<16x16xf32>
    %cst_39 = arith.constant dense<0.000000e+00> : vector<16xf32>
    %121 = vector.multi_reduction <add>, %120, %cst_39 [1] : vector<16x16xf32> to vector<16xf32>
    %122 = vector.shape_cast %121 : vector<16xf32> to vector<16x1xf32>
    %123 = tpu.reciprocal %122 {approx = true} : vector<16x1xf32> -> vector<16x1xf32>
    %cst_40 = arith.constant dense<0.000000e+00> : vector<16x32xf32>
    %124 = tpu.matmul %120, %93, %cst_40 {dimension_numbers = #tpu.dot_dimension_numbers<[1], [0], [0], [1], [0, 0, 1, 1], [], []>} : vector<16x16xf32>, vector<16x32xf32>, vector<16x32xf32> -> vector<16x32xf32>
    %125 = vector.broadcast %123 : vector<16x1xf32> to vector<16x32xf32>
    %126 = arith.mulf %124, %125 : vector<16x32xf32>
    %127 = arith.truncf %126 : vector<16x32xf32> to vector<16x32xbf16>
    %c0_41 = arith.constant 0 : index
    %c0_42 = arith.constant 0 : index
    %128 = vector.load %arg2[%c0_41, %c0_42] : memref<64x64xbf16, #tpu.memory_space<vmem>>, vector<32x64xbf16>
    %cst_43 = arith.constant dense<0.000000e+00> : vector<16x64xf32>
    %129 = tpu.matmul %127, %128, %cst_43 {dimension_numbers = #tpu.dot_dimension_numbers<[1], [0], [0], [1], [0, 0, 1, 1], [], []>} : vector<16x32xbf16>, vector<32x64xbf16>, vector<16x64xf32> -> vector<16x64xf32>
    %130 = arith.addf %90, %129 : vector<16x64xf32>
    %131 = vector.extract_strided_slice %3 {offsets = [16, 64], sizes = [16, 32], strides = [1, 1]} : vector<32x192xf32> to vector<16x32xf32>
    %132 = vector.extract_strided_slice %3 {offsets = [16, 96], sizes = [16, 32], strides = [1, 1]} : vector<32x192xf32> to vector<16x32xf32>
    %133 = vector.extract_strided_slice %3 {offsets = [16, 160], sizes = [16, 32], strides = [1, 1]} : vector<32x192xf32> to vector<16x32xf32>
    %134 = arith.mulf %131, %131 : vector<16x32xf32>
    %cst_44 = arith.constant dense<0.000000e+00> : vector<16xf32>
    %135 = vector.multi_reduction <add>, %134, %cst_44 [1] : vector<16x32xf32> to vector<16xf32>
    %136 = vector.shape_cast %135 : vector<16xf32> to vector<16x1xf32>
    %cst_45 = arith.constant 1.000000e-24 : f32
    %137 = vector.broadcast %cst_45 : f32 to vector<16x1xf32>
    %138 = arith.maximumf %136, %137 : vector<16x1xf32>
    %139 = math.rsqrt %138 : vector<16x1xf32>
    %140 = vector.broadcast %139 : vector<16x1xf32> to vector<16x32xf32>
    %141 = arith.mulf %131, %140 : vector<16x32xf32>
    %142 = arith.mulf %132, %132 : vector<16x32xf32>
    %cst_46 = arith.constant dense<0.000000e+00> : vector<16xf32>
    %143 = vector.multi_reduction <add>, %142, %cst_46 [1] : vector<16x32xf32> to vector<16xf32>
    %144 = vector.shape_cast %143 : vector<16xf32> to vector<16x1xf32>
    %cst_47 = arith.constant 1.000000e-24 : f32
    %145 = vector.broadcast %cst_47 : f32 to vector<16x1xf32>
    %146 = arith.maximumf %144, %145 : vector<16x1xf32>
    %147 = math.rsqrt %146 : vector<16x1xf32>
    %148 = vector.broadcast %147 : vector<16x1xf32> to vector<16x32xf32>
    %149 = arith.mulf %132, %148 : vector<16x32xf32>
    %150 = vector.extract_strided_slice %4 {offsets = [0, 32], sizes = [1, 32], strides = [1, 1]} : vector<1x64xf32> to vector<1x32xf32>
    %151 = vector.broadcast %150 : vector<1x32xf32> to vector<16x32xf32>
    %152 = arith.mulf %141, %151 : vector<16x32xf32>
    %cst_48 = arith.constant dense<0.000000e+00> : vector<16x16xf32>
    %153 = tpu.matmul %152, %149, %cst_48 {dimension_numbers = #tpu.dot_dimension_numbers<[1], [1], [0], [0], [0, 0, 1, 0], [], []>} : vector<16x32xf32>, vector<16x32xf32>, vector<16x16xf32> -> vector<16x16xf32>
    %cst_49 = arith.constant -1.000000e+30 : f32
    %154 = vector.broadcast %cst_49 : f32 to vector<16x16xf32>
    %155 = arith.select %7, %153, %154 : vector<16x16xi1>, vector<16x16xf32>
    %cst_50 = arith.constant dense<0xFF800000> : vector<16xf32>
    %156 = vector.multi_reduction <maximumf>, %155, %cst_50 [1] : vector<16x16xf32> to vector<16xf32>
    %157 = vector.shape_cast %156 : vector<16xf32> to vector<16x1xf32>
    %158 = vector.broadcast %157 : vector<16x1xf32> to vector<16x16xf32>
    %159 = arith.subf %155, %158 : vector<16x16xf32>
    %160 = math.exp %159 : vector<16x16xf32>
    %cst_51 = arith.constant dense<0.000000e+00> : vector<16xf32>
    %161 = vector.multi_reduction <add>, %160, %cst_51 [1] : vector<16x16xf32> to vector<16xf32>
    %162 = vector.shape_cast %161 : vector<16xf32> to vector<16x1xf32>
    %163 = tpu.reciprocal %162 {approx = true} : vector<16x1xf32> -> vector<16x1xf32>
    %cst_52 = arith.constant dense<0.000000e+00> : vector<16x32xf32>
    %164 = tpu.matmul %160, %133, %cst_52 {dimension_numbers = #tpu.dot_dimension_numbers<[1], [0], [0], [1], [0, 0, 1, 1], [], []>} : vector<16x16xf32>, vector<16x32xf32>, vector<16x32xf32> -> vector<16x32xf32>
    %165 = vector.broadcast %163 : vector<16x1xf32> to vector<16x32xf32>
    %166 = arith.mulf %164, %165 : vector<16x32xf32>
    %167 = arith.truncf %166 : vector<16x32xf32> to vector<16x32xbf16>
    %c32_53 = arith.constant 32 : index
    %c0_54 = arith.constant 0 : index
    %168 = vector.load %arg2[%c32_53, %c0_54] : memref<64x64xbf16, #tpu.memory_space<vmem>>, vector<32x64xbf16>
    %cst_55 = arith.constant dense<0.000000e+00> : vector<16x64xf32>
    %169 = tpu.matmul %167, %168, %cst_55 {dimension_numbers = #tpu.dot_dimension_numbers<[1], [0], [0], [1], [0, 0, 1, 1], [], []>} : vector<16x32xbf16>, vector<32x64xbf16>, vector<16x64xf32> -> vector<16x64xf32>
    %170 = arith.addf %130, %169 : vector<16x64xf32>
    %c16 = arith.constant 16 : index
    %c0_56 = arith.constant 0 : index
    %171 = vector.load %arg4[%c16, %c0_56] : memref<32x64xf32, #tpu.memory_space<vmem>>, vector<16x64xf32>
    tpu.vector_store %arg4[%c16, %c0_56], %170 {strides = array<i32>} : memref<32x64xf32, #tpu.memory_space<vmem>>, vector<16x64xf32>,
    return
  }
}

</mosaic_0001>

<llo_original>
// kernel: attention_forward.1
$region0: #{attention_forward.1}
  #allocation0 [shape = 'u32[]', space=smem, size = 0x4, offset = 0x4, fixed_abs, tag = 'smem constant byte address 0x4 - core index']
  #allocation1 [shape = 'u32[144,128]{1,0:T(1,128)}', space=vmem, size = 0x12000, scoped, tag = 'internal scratch']
  %s0 = inlined_call_operand.vmem [shape: f32[32,64], index: 0, kind: input, shape index: {}]
  %s1 = inlined_call_operand.vmem [shape: bf16[64,192], index: 1, kind: input, shape index: {}]
  %s2 = inlined_call_operand.vmem [shape: bf16[64,64], index: 2, kind: input, shape index: {}]
  %s3 = inlined_call_operand.vmem [shape: f32[1,64], index: 3, kind: input, shape index: {}]
  %s4 = inlined_call_operand.hbm [shape: f32[32,64], index: 4, kind: output, shape index: {}]
  %s5 = sld [smem:[#allocation0]]
  $region26: #{attention_forward.1} parent=0
    _
  %s7 = ssub.s32 1, %s5
  %s8 = scalar_select 0, %s7, %s5
  $region1: #{attention_forward.1} parent=0
    #allocation2 [shape = 'u8[16384]{0}', space=vmem, size = 0x4000, scoped, tag = 'output window, operand 0, single buffered']
    #allocation3 [shape = 's32[1]{0}', space=sflag, size = 0x4, scoped, tag = 'scoped memory for attention_forward.1']
    %9 = vsyncpa [#allocation3], 0
    // Predicated region
    $region2: #{attention_forward.1} parent=1 // pred_check
      _
    $region3: #{attention_forward.1} parent=1 // pred_check_branch
      %11 = sbr.rel (0) target = $region5
    $region4: #{attention_forward.1} parent=1 // pred_region
      _
    $region5: #{attention_forward.1} parent=1 // pred_fallthru
      _
    // Predicated region
    $region6: #{attention_forward.1} parent=1 // pred_check
      _
    $region7: #{attention_forward.1} parent=1 // pred_check_branch
      %13 = sbr.rel (0) target = $region9
    $region8: #{attention_forward.1} parent=1 // pred_region
      _
    $region9: #{attention_forward.1} parent=1 // pred_fallthru
      _
    // Predicated region
    $region10: #{attention_forward.1} parent=1 // pred_check
      _
    $region11: #{attention_forward.1} parent=1 // pred_check_branch
      %15 = sbr.rel (0) target = $region13
    $region12: #{attention_forward.1} parent=1 // pred_region
      _
    $region13: #{attention_forward.1} parent=1 // pred_fallthru
      _
    // Predicated region
    $region14: #{attention_forward.1} parent=1 // pred_check
      _
    $region15: #{attention_forward.1} parent=1 // pred_check_branch
      %17 = sbr.rel (0) target = $region17
    $region16: #{attention_forward.1} parent=1 // pred_region
      _
    $region17: #{attention_forward.1} parent=1 // pred_fallthru
      _
    %v19 = vld [vmem:[%s0] sm:$0xff]
    %v20 = vld [vmem:[%s0 + $0x8] sm:$0xff]
    %v21 = vld [vmem:[%s0 + $0x10] sm:$0xff]
    %v22 = vld [vmem:[%s0 + $0x18] sm:$0xff]
    %v23 = vpack.c.bf16 %v20, %v19
    %v24 = vpack.c.bf16 %v22, %v21
    %v25 = vld [vmem:[%s1] sm:$0xff]
    %v26 = vld [vmem:[%s1 + $0x8] sm:$0xff]
    %v27 = vld [vmem:[%s1 + $0x10] sm:$0xff]
    %v28 = vld [vmem:[%s1 + $0x18] sm:$0xff]
    %v29 = vld [vmem:[%s1 + $0x20] sm:$0xff]
    %v30 = vld [vmem:[%s1 + $0x28] sm:$0xff]
    %v31 = vld [vmem:[%s1 + $0x30] sm:$0xff]
    %v32 = vld [vmem:[%s1 + $0x38] sm:$0xff]
    %v41 = vunpack.c.l.b16 %v25
    %v42 = vunpack.c.h.b16 %v25
    %v43 = vunpack.c.l.b16 %v26
    %v44 = vunpack.c.h.b16 %v26
    %v45 = vunpack.c.l.b16 %v27
    %v46 = vunpack.c.h.b16 %v27
    %v47 = vunpack.c.l.b16 %v28
    %v48 = vunpack.c.h.b16 %v28
    %v49 = vunpack.c.l.b16 %v29
    %v50 = vunpack.c.h.b16 %v29
    %v51 = vunpack.c.l.b16 %v30
    %v52 = vunpack.c.h.b16 %v30
    %v53 = vunpack.c.l.b16 %v31
    %v54 = vunpack.c.h.b16 %v31
    %v55 = vunpack.c.l.b16 %v32
    %v56 = vunpack.c.h.b16 %v32
    %v57 = vpack.c.b16 %v43, %v41
    %v58 = vpack.c.b16 %v44, %v42
    %v59 = vpack.c.b16 %v47, %v45
    %v60 = vpack.c.b16 %v48, %v46
    %v61 = vpack.c.b16 %v51, %v49
    %v62 = vpack.c.b16 %v52, %v50
    %v63 = vpack.c.b16 %v55, %v53
    %v64 = vpack.c.b16 %v56, %v54
    %vm73 = vcmask 523264
    %v75 = vsel %vm73, %v23, 0
    %v78 = vsel %vm73, %v24, 0
    %80 = vmatprep.subr.bf16.mxu0 %v58
    %81 = vmatpush1.bf16.msra.mxu0 %v57
    %82 = vmatprep.subr.bf16.mxu0 %v60
    %83 = vmatpush1.bf16.msra.mxu0 %v59
    %84 = vmatprep.subr.bf16.mxu0 %v62
    %85 = vmatpush1.bf16.msra.mxu0 %v61
    %86 = vmatprep.subr.bf16.mxu0 %v64
    %87 = vmatpush1.bf16.msra.mxu0 %v63
    %88 = vmatprep.subr.bf16.mxu0 0
    %89 = vmatpush1.bf16.msra.mxu0 0
    %90 = vmatprep.subr.bf16.mxu0 0
    %91 = vmatpush1.bf16.msra.mxu0 0
    %92 = vmatprep.subr.bf16.mxu0 0
    %93 = vmatpush1.bf16.msra.mxu0 0
    %94 = vmatprep.subr.bf16.mxu0 0
    %95 = vmatpush1.bf16.msra.mxu0 0
    %96 = vmatprep.subr.bf16.mxu0 0
    %97 = vmatpush1.bf16.msra.mxu0 0
    %98 = vmatprep.subr.bf16.mxu0 0
    %99 = vmatpush1.bf16.msra.mxu0 0
    %100 = vmatprep.subr.bf16.mxu0 0
    %101 = vmatpush1.bf16.msra.mxu0 0
    %102 = vmatprep.subr.bf16.mxu0 0
    %103 = vmatpush1.bf16.msra.mxu0 0
    %104 = vmatprep.subr.bf16.mxu0 0
    %105 = vmatpush1.bf16.msra.mxu0 0
    %106 = vmatprep.subr.bf16.mxu0 0
    %107 = vmatpush1.bf16.msra.mxu0 0
    %108 = vmatprep.subr.bf16.mxu0 0
    %109 = vmatpush1.bf16.msra.mxu0 0
    %110 = vmatprep.subr.bf16.mxu0 0
    %111 = vmatpush1.bf16.msra.mxu0 0
    %112 = vmatprep.mubr.bf16.mxu0 0
    %113 = vmatmul.mubr.bf16.gmra.mrb[0].mxu0 %v75
    %v114 = vpop.f32.mrb[0].mxu0
    %v115 = vadd.f32 0.0, %v114
    %v116 = vpop.f32.mrb[0].mxu0
    %v117 = vadd.f32 0.0, %v116
    %v118 = vpop.f32.mrb[0].mxu0
    %v119 = vadd.f32 0.0, %v118
    %v120 = vpop.f32.mrb[0].mxu0
    %v121 = vadd.f32 0.0, %v120
    %122 = vmatprep.mubr.bf16.mxu0 0
    %123 = vmatmul.mubr.bf16.gmra.mrb[0].mxu0 %v78
    %v124 = vpop.f32.mrb[0].mxu0
    %v125 = vadd.f32 0.0, %v124
    %v126 = vpop.f32.mrb[0].mxu0
    %v127 = vadd.f32 0.0, %v126
    %v128 = vpop.f32.mrb[0].mxu0
    %v129 = vadd.f32 0.0, %v128
    %v130 = vpop.f32.mrb[0].mxu0
    %v131 = vadd.f32 0.0, %v130
    %132 = vdwg.mxu0
    %v133 = vld [vmem:[%s3] sm:$0x1]
    %v134 = vlaneseq
    %v135 = vshrl.u32 %v134, 7
    %v136 = vadd.s32 %v135, 8
    %v137 = vlaneseq
    %v138 = vand.u32 %v137, 127
    %vm139 = vcmp.ge.s32.totalorder %v135, %v138
    %vm140 = vcmp.ge.s32.totalorder %v136, %v138
    %v141 = vmul.f32 %v115, %v115
    %v142 = vmul.f32 %v119, %v119
    %vm143 = vcmask 261120
    %v144 = vsel %vm143, %v141, 0.0
    %145 = vadd.xlane.f32.xlu0 %v144
    %v146 = vpop.xlane.xlu0 %145
    %v147 = vsel %vm143, %v142, 0.0
    %148 = vadd.xlane.f32.xlu0 %v147
    %v149 = vpop.xlane.xlu0 %148
    %v150 = vmax.f32 %v146, 1e-24
    %v151 = vmax.f32 %v149, 1e-24
    %v152 = vrsqrt.pop %v150
    %v153 = vrsqrt.pop %v151
    %v154 = vmul.f32 %v115, %v152
    %v155 = vmul.f32 %v119, %v153
    %158 = vrot.lane.b32.xlu0 %v141, 96
    %v159 = vpop.permute.xlu0 %158
    %160 = vrot.lane.b32.xlu0 %v142, 96
    %v161 = vpop.permute.xlu0 %160
    %v164 = vsel %vm143, %v159, 0.0
    %165 = vadd.xlane.f32.xlu0 %v164
    %v166 = vpop.xlane.xlu0 %165
    %v167 = vsel %vm143, %v161, 0.0
    %168 = vadd.xlane.f32.xlu0 %v167
    %v169 = vpop.xlane.xlu0 %168
    %v170 = vmax.f32 %v166, 1e-24
    %v171 = vmax.f32 %v169, 1e-24
    %v172 = vrsqrt.pop %v170
    %v173 = vrsqrt.pop %v171
    %v174 = vmul.f32 %v115, %v172
    %v175 = vmul.f32 %v119, %v173
    %v177 = vlaneseq
    %v178 = vshrl.u32 %v177, 7
    %v179 = vsub.s32 0, %v178
    %v180 = vrot.slane %v133, %v179
    %v182 = vmul.f32 %v154, %v180
    %v183 = vmul.f32 %v155, %v180
    %186 = vrot.lane.b32.xlu0 %v174, 96
    %v187 = vpop.permute.xlu0 %186
    %188 = vrot.lane.b32.xlu0 %v175, 96
    %v189 = vpop.permute.xlu0 %188
    %v191 = vsel %vm143, %v182, 0
    %v194 = vsel %vm143, %v183, 0
    %v196 = vsel %vm143, %v187, 0
    %v198 = vsel %vm143, %v189, 0
    %200 = vmatprep.subr.mxu0 0.0
    %201 = vmatpush1.xpose.msra.mxu0 %v196
    %202 = vmatprep.subr.mxu0 0.0
    %203 = vmatpush1.xpose.msra.mxu0 %v198
    %204 = vmatprep.subr.mxu0 0.0
    %205 = vmatpush1.xpose.msra.mxu0 0.0
    %206 = vmatprep.subr.mxu0 0.0
    %207 = vmatpush1.xpose.msra.mxu0 0.0
    %208 = vmatprep.subr.mxu0 0.0
    %209 = vmatpush1.xpose.msra.mxu0 0.0
    %210 = vmatprep.subr.mxu0 0.0
    %211 = vmatpush1.xpose.msra.mxu0 0.0
    %212 = vmatprep.subr.mxu0 0.0
    %213 = vmatpush1.xpose.msra.mxu0 0.0
    %214 = vmatprep.subr.mxu0 0.0
    %215 = vmatpush1.xpose.msra.mxu0 0.0
    %216 = vmatprep.subr.mxu0 0.0
    %217 = vmatpush1.xpose.msra.mxu0 0.0
    %218 = vmatprep.subr.mxu0 0.0
    %219 = vmatpush1.xpose.msra.mxu0 0.0
    %220 = vmatprep.subr.mxu0 0.0
    %221 = vmatpush1.xpose.msra.mxu0 0.0
    %222 = vmatprep.subr.mxu0 0.0
    %223 = vmatpush1.xpose.msra.mxu0 0.0
    %224 = vmatprep.subr.mxu0 0.0
    %225 = vmatpush1.xpose.msra.mxu0 0.0
    %226 = vmatprep.subr.mxu0 0.0
    %227 = vmatpush1.xpose.msra.mxu0 0.0
    %228 = vmatprep.subr.mxu0 0.0
    %229 = vmatpush1.xpose.msra.mxu0 0.0
    %230 = vmatprep.subr.mxu0 0.0
    %231 = vmatpush1.xpose.msra.mxu0 0.0
    %232 = vmatprep.subr.mxu0 0.0
    %233 = vmatpush1.xpose.msra.mxu0 0.0
    %234 = vmatprep.subr.mxu0 0.0
    %235 = vmatpush1.xpose.msra.mxu0 0.0
    %236 = vmatprep.subr.mxu0 0.0
    %237 = vmatpush1.xpose.msra.mxu0 0.0
    %238 = vmatprep.subr.mxu0 0.0
    %239 = vmatpush1.xpose.msra.mxu0 0.0
    %240 = vmatprep.subr.mxu0 0.0
    %241 = vmatpush1.xpose.msra.mxu0 0.0
    %242 = vmatprep.subr.mxu0 0.0
    %243 = vmatpush1.xpose.msra.mxu0 0.0
    %244 = vmatprep.subr.mxu0 0.0
    %245 = vmatpush1.xpose.msra.mxu0 0.0
    %246 = vmatprep.subr.mxu0 0.0
    %247 = vmatpush1.xpose.msra.mxu0 0.0
    %248 = vmatprep.subr.mxu0 0.0
    %249 = vmatpush1.xpose.msra.mxu0 0.0
    %250 = vmatprep.subr.mxu0 0.0
    %251 = vmatpush1.xpose.msra.mxu0 0.0
    %252 = vmatprep.subr.mxu0 0.0
    %253 = vmatpush1.xpose.msra.mxu0 0.0
    %254 = vmatprep.subr.mxu0 0.0
    %255 = vmatpush1.xpose.msra.mxu0 0.0
    %256 = vmatprep.subr.mxu0 0.0
    %257 = vmatpush1.xpose.msra.mxu0 0.0
    %258 = vmatprep.subr.mxu0 0.0
    %259 = vmatpush1.xpose.msra.mxu0 0.0
    %260 = vmatprep.subr.mxu0 0.0
    %261 = vmatpush1.xpose.msra.mxu0 0.0
    %262 = vmatprep.subr.mxu0 0.0
    %263 = vmatpush1.xpose.msra.mxu0 0.0
    %264 = vmatprep.mubr.f32.mxu0 0.0
    %265 = vmatmul.mubr.f32.gmra.mrb[0].mxu0 %v191
    %v266 = vpop.f32.mrb[0].mxu0
    %v267 = vadd.f32 0.0, %v266
    %v268 = vpop.f32.mrb[0].mxu0
    %269 = vmatprep.mubr.f32.mxu0 0.0
    %270 = vmatmul.mubr.f32.gmra.mrb[0].mxu0 %v194
    %v271 = vpop.f32.mrb[0].mxu0
    %v272 = vadd.f32 0.0, %v271
    %v273 = vpop.f32.mrb[0].mxu0
    %274 = vdwg.mxu0
    %v275 = vsel %vm139, %v267, -1e+30
    %v276 = vsel %vm140, %v272, -1e+30
    %vm277 = vcmask 130048
    %v278 = vsel %vm277, %v275, -inf
    %279 = vmax.xlane.f32.xlu0 %v278
    %v280 = vpop.xlane.xlu0 %279
    %v281 = vsel %vm277, %v276, -inf
    %282 = vmax.xlane.f32.xlu0 %v281
    %v283 = vpop.xlane.xlu0 %282
    %v284 = vsub.f32 %v275, %v280
    %v285 = vsub.f32 %v276, %v283
    %v286 = vmul.f32 %v284, 1.442695
    %v287 = vpow.pop %v286
    %v288 = vmul.f32 %v285, 1.442695
    %v289 = vpow.pop %v288
    %v290 = vsel %vm277, %v287, 0.0
    %291 = vadd.xlane.f32.xlu0 %v290
    %v292 = vpop.xlane.xlu0 %291
    %v293 = vsel %vm277, %v289, 0.0
    %294 = vadd.xlane.f32.xlu0 %v293
    %v295 = vpop.xlane.xlu0 %294
    %v296 = vrcp.pop %v292
    %v297 = vrcp.pop %v295
    %v299 = vsel %vm277, %v287, 0
    %v302 = vsel %vm277, %v289, 0
    %304 = vmatprep.subr.mxu0 0.0
    %305 = vmatpush1.msra.mxu0 %v117
    %306 = vmatprep.subr.mxu0 0.0
    %307 = vmatpush1.msra.mxu0 %v121
    %308 = vmatprep.subr.mxu0 0.0
    %309 = vmatpush1.msra.mxu0 0.0
    %310 = vmatprep.subr.mxu0 0.0
    %311 = vmatpush1.msra.mxu0 0.0
    %312 = vmatprep.subr.mxu0 0.0
    %313 = vmatpush1.msra.mxu0 0.0
    %314 = vmatprep.subr.mxu0 0.0
    %315 = vmatpush1.msra.mxu0 0.0
    %316 = vmatprep.subr.mxu0 0.0
    %317 = vmatpush1.msra.mxu0 0.0
    %318 = vmatprep.subr.mxu0 0.0
    %319 = vmatpush1.msra.mxu0 0.0
    %320 = vmatprep.subr.mxu0 0.0
    %321 = vmatpush1.msra.mxu0 0.0
    %322 = vmatprep.subr.mxu0 0.0
    %323 = vmatpush1.msra.mxu0 0.0
    %324 = vmatprep.subr.mxu0 0.0
    %325 = vmatpush1.msra.mxu0 0.0
    %326 = vmatprep.subr.mxu0 0.0
    %327 = vmatpush1.msra.mxu0 0.0
    %328 = vmatprep.subr.mxu0 0.0
    %329 = vmatpush1.msra.mxu0 0.0
    %330 = vmatprep.subr.mxu0 0.0
    %331 = vmatpush1.msra.mxu0 0.0
    %332 = vmatprep.subr.mxu0 0.0
    %333 = vmatpush1.msra.mxu0 0.0
    %334 = vmatprep.subr.mxu0 0.0
    %335 = vmatpush1.msra.mxu0 0.0
    %336 = vmatprep.subr.mxu0 0.0
    %337 = vmatpush1.msra.mxu0 0.0
    %338 = vmatprep.subr.mxu0 0.0
    %339 = vmatpush1.msra.mxu0 0.0
    %340 = vmatprep.subr.mxu0 0.0
    %341 = vmatpush1.msra.mxu0 0.0
    %342 = vmatprep.subr.mxu0 0.0
    %343 = vmatpush1.msra.mxu0 0.0
    %344 = vmatprep.subr.mxu0 0.0
    %345 = vmatpush1.msra.mxu0 0.0
    %346 = vmatprep.subr.mxu0 0.0
    %347 = vmatpush1.msra.mxu0 0.0
    %348 = vmatprep.subr.mxu0 0.0
    %349 = vmatpush1.msra.mxu0 0.0
    %350 = vmatprep.subr.mxu0 0.0
    %351 = vmatpush1.msra.mxu0 0.0
    %352 = vmatprep.subr.mxu0 0.0
    %353 = vmatpush1.msra.mxu0 0.0
    %354 = vmatprep.subr.mxu0 0.0
    %355 = vmatpush1.msra.mxu0 0.0
    %356 = vmatprep.subr.mxu0 0.0
    %357 = vmatpush1.msra.mxu0 0.0
    %358 = vmatprep.subr.mxu0 0.0
    %359 = vmatpush1.msra.mxu0 0.0
    %360 = vmatprep.subr.mxu0 0.0
    %361 = vmatpush1.msra.mxu0 0.0
    %362 = vmatprep.subr.mxu0 0.0
    %363 = vmatpush1.msra.mxu0 0.0
    %364 = vmatprep.subr.mxu0 0.0
    %365 = vmatpush1.msra.mxu0 0.0
    %366 = vmatprep.subr.mxu0 0.0
    %367 = vmatpush1.msra.mxu0 0.0
    %368 = vmatprep.mubr.f32.mxu0 0.0
    %369 = vmatmul.mubr.f32.gmra.mrb[0].mxu0 %v299
    %v370 = vpop.f32.mrb[0].mxu0
    %v371 = vadd.f32 0.0, %v370
    %v372 = vpop.f32.mrb[0].mxu0
    %373 = vmatprep.mubr.f32.mxu0 0.0
    %374 = vmatmul.mubr.f32.gmra.mrb[0].mxu0 %v302
    %v375 = vpop.f32.mrb[0].mxu0
    %v376 = vadd.f32 0.0, %v375
    %v377 = vpop.f32.mrb[0].mxu0
    %378 = vdwg.mxu0
    %v379 = vmul.f32 %v371, %v296
    %v380 = vmul.f32 %v376, %v297
    %v381 = vpack.c.bf16 %v380, %v379
    %v382 = vld [vmem:[%s2] sm:$0xf]
    %v383 = vld [vmem:[%s2 + $0x4] sm:$0xf]
    %v384 = vld [vmem:[%s2 + $0x8] sm:$0xf]
    %v385 = vld [vmem:[%s2 + $0xc] sm:$0xf]
    %386 = vrot.lane.b32.xlu0 %v141, 64
    %v387 = vpop.permute.xlu0 %386
    %388 = vrot.lane.b32.xlu0 %v142, 64
    %v389 = vpop.permute.xlu0 %388
    %v392 = vsel %vm143, %v387, 0.0
    %393 = vadd.xlane.f32.xlu0 %v392
    %v394 = vpop.xlane.xlu0 %393
    %v395 = vsel %vm143, %v389, 0.0
    %396 = vadd.xlane.f32.xlu0 %v395
    %v397 = vpop.xlane.xlu0 %396
    %v398 = vmax.f32 %v394, 1e-24
    %v399 = vmax.f32 %v397, 1e-24
    %v400 = vrsqrt.pop %v398
    %v401 = vrsqrt.pop %v399
    %v402 = vmul.f32 %v115, %v400
    %v403 = vmul.f32 %v119, %v401
    %404 = vrot.lane.b32.xlu0 %v141, 32
    %v405 = vpop.permute.xlu0 %404
    %406 = vrot.lane.b32.xlu0 %v142, 32
    %v407 = vpop.permute.xlu0 %406
    %v410 = vsel %vm143, %v405, 0.0
    %411 = vadd.xlane.f32.xlu0 %v410
    %v412 = vpop.xlane.xlu0 %411
    %v413 = vsel %vm143, %v407, 0.0
    %414 = vadd.xlane.f32.xlu0 %v413
    %v415 = vpop.xlane.xlu0 %414
    %v416 = vmax.f32 %v412, 1e-24
    %v417 = vmax.f32 %v415, 1e-24
    %v418 = vrsqrt.pop %v416
    %v419 = vrsqrt.pop %v417
    %v420 = vmul.f32 %v115, %v418
    %v421 = vmul.f32 %v119, %v419
    %422 = vrot.lane.b32.xlu0 %v180, 32
    %v423 = vpop.permute.xlu0 %422
    %v425 = vmul.f32 %v402, %v423
    %v426 = vmul.f32 %v403, %v423
    %429 = vrot.lane.b32.xlu0 %v425, 64
    %v430 = vpop.permute.xlu0 %429
    %431 = vrot.lane.b32.xlu0 %v426, 64
    %v432 = vpop.permute.xlu0 %431
    %435 = vrot.lane.b32.xlu0 %v420, 32
    %v436 = vpop.permute.xlu0 %435
    %437 = vrot.lane.b32.xlu0 %v421, 32
    %v438 = vpop.permute.xlu0 %437
    %v439 = vsel %vm143, %v430, 0
    %v441 = vsel %vm143, %v432, 0
    %v443 = vsel %vm143, %v436, 0
    %v445 = vsel %vm143, %v438, 0
    %447 = vmatprep.subr.mxu0 0.0
    %448 = vmatpush1.xpose.msra.mxu0 %v443
    %449 = vmatprep.subr.mxu0 0.0
    %450 = vmatpush1.xpose.msra.mxu0 %v445
    %451 = vmatprep.subr.mxu0 0.0
    %452 = vmatpush1.xpose.msra.mxu0 0.0
    %453 = vmatprep.subr.mxu0 0.0
    %454 = vmatpush1.xpose.msra.mxu0 0.0
    %455 = vmatprep.subr.mxu0 0.0
    %456 = vmatpush1.xpose.msra.mxu0 0.0
    %457 = vmatprep.subr.mxu0 0.0
    %458 = vmatpush1.xpose.msra.mxu0 0.0
    %459 = vmatprep.subr.mxu0 0.0
    %460 = vmatpush1.xpose.msra.mxu0 0.0
    %461 = vmatprep.subr.mxu0 0.0
    %462 = vmatpush1.xpose.msra.mxu0 0.0
    %463 = vmatprep.subr.mxu0 0.0
    %464 = vmatpush1.xpose.msra.mxu0 0.0
    %465 = vmatprep.subr.mxu0 0.0
    %466 = vmatpush1.xpose.msra.mxu0 0.0
    %467 = vmatprep.subr.mxu0 0.0
    %468 = vmatpush1.xpose.msra.mxu0 0.0
    %469 = vmatprep.subr.mxu0 0.0
    %470 = vmatpush1.xpose.msra.mxu0 0.0
    %471 = vmatprep.subr.mxu0 0.0
    %472 = vmatpush1.xpose.msra.mxu0 0.0
    %473 = vmatprep.subr.mxu0 0.0
    %474 = vmatpush1.xpose.msra.mxu0 0.0
    %475 = vmatprep.subr.mxu0 0.0
    %476 = vmatpush1.xpose.msra.mxu0 0.0
    %477 = vmatprep.subr.mxu0 0.0
    %478 = vmatpush1.xpose.msra.mxu0 0.0
    %479 = vmatprep.subr.mxu0 0.0
    %480 = vmatpush1.xpose.msra.mxu0 0.0
    %481 = vmatprep.subr.mxu0 0.0
    %482 = vmatpush1.xpose.msra.mxu0 0.0
    %483 = vmatprep.subr.mxu0 0.0
    %484 = vmatpush1.xpose.msra.mxu0 0.0
    %485 = vmatprep.subr.mxu0 0.0
    %486 = vmatpush1.xpose.msra.mxu0 0.0
    %487 = vmatprep.subr.mxu0 0.0
    %488 = vmatpush1.xpose.msra.mxu0 0.0
    %489 = vmatprep.subr.mxu0 0.0
    %490 = vmatpush1.xpose.msra.mxu0 0.0
    %491 = vmatprep.subr.mxu0 0.0
    %492 = vmatpush1.xpose.msra.mxu0 0.0
    %493 = vmatprep.subr.mxu0 0.0
    %494 = vmatpush1.xpose.msra.mxu0 0.0
    %495 = vmatprep.subr.mxu0 0.0
    %496 = vmatpush1.xpose.msra.mxu0 0.0
    %497 = vmatprep.subr.mxu0 0.0
    %498 = vmatpush1.xpose.msra.mxu0 0.0
    %499 = vmatprep.subr.mxu0 0.0
    %500 = vmatpush1.xpose.msra.mxu0 0.0
    %501 = vmatprep.subr.mxu0 0.0
    %502 = vmatpush1.xpose.msra.mxu0 0.0
    %503 = vmatprep.subr.mxu0 0.0
    %504 = vmatpush1.xpose.msra.mxu0 0.0
    %505 = vmatprep.subr.mxu0 0.0
    %506 = vmatpush1.xpose.msra.mxu0 0.0
    %507 = vmatprep.subr.mxu0 0.0
    %508 = vmatpush1.xpose.msra.mxu0 0.0
    %509 = vmatprep.subr.mxu0 0.0
    %510 = vmatpush1.xpose.msra.mxu0 0.0
    %511 = vmatprep.mubr.f32.mxu0 0.0
    %512 = vmatmul.mubr.f32.gmra.mrb[0].mxu0 %v439
    %v513 = vpop.f32.mrb[0].mxu0
    %v514 = vadd.f32 0.0, %v513
    %v515 = vpop.f32.mrb[0].mxu0
    %516 = vmatprep.mubr.f32.mxu0 0.0
    %517 = vmatmul.mubr.f32.gmra.mrb[0].mxu0 %v441
    %v518 = vpop.f32.mrb[0].mxu0
    %v519 = vadd.f32 0.0, %v518
    %v520 = vpop.f32.mrb[0].mxu0
    %521 = vdwg.mxu0
    %v522 = vsel %vm139, %v514, -1e+30
    %v523 = vsel %vm140, %v519, -1e+30
    %v524 = vsel %vm277, %v522, -inf
    %525 = vmax.xlane.f32.xlu0 %v524
    %v526 = vpop.xlane.xlu0 %525
    %v527 = vsel %vm277, %v523, -inf
    %528 = vmax.xlane.f32.xlu0 %v527
    %v529 = vpop.xlane.xlu0 %528
    %v530 = vsub.f32 %v522, %v526
    %v531 = vsub.f32 %v523, %v529
    %v532 = vmul.f32 %v530, 1.442695
    %v533 = vpow.pop %v532
    %v534 = vmul.f32 %v531, 1.442695
    %v535 = vpow.pop %v534
    %v536 = vsel %vm277, %v533, 0.0
    %537 = vadd.xlane.f32.xlu0 %v536
    %v538 = vpop.xlane.xlu0 %537
    %v539 = vsel %vm277, %v535, 0.0
    %540 = vadd.xlane.f32.xlu0 %v539
    %v541 = vpop.xlane.xlu0 %540
    %v542 = vrcp.pop %v538
    %v543 = vrcp.pop %v541
    %546 = vrot.lane.b32.xlu0 %v117, 96
    %v547 = vpop.permute.xlu0 %546
    %548 = vrot.lane.b32.xlu0 %v121, 96
    %v549 = vpop.permute.xlu0 %548
    %v553 = vsel %vm277, %v533, 0
    %v556 = vsel %vm277, %v535, 0
    %558 = vmatprep.subr.mxu0 0.0
    %559 = vmatpush1.msra.mxu0 %v547
    %560 = vmatprep.subr.mxu0 0.0
    %561 = vmatpush1.msra.mxu0 %v549
    %562 = vmatprep.subr.mxu0 0.0
    %563 = vmatpush1.msra.mxu0 0.0
    %564 = vmatprep.subr.mxu0 0.0
    %565 = vmatpush1.msra.mxu0 0.0
    %566 = vmatprep.subr.mxu0 0.0
    %567 = vmatpush1.msra.mxu0 0.0
    %568 = vmatprep.subr.mxu0 0.0
    %569 = vmatpush1.msra.mxu0 0.0
    %570 = vmatprep.subr.mxu0 0.0
    %571 = vmatpush1.msra.mxu0 0.0
    %572 = vmatprep.subr.mxu0 0.0
    %573 = vmatpush1.msra.mxu0 0.0
    %574 = vmatprep.subr.mxu0 0.0
    %575 = vmatpush1.msra.mxu0 0.0
    %576 = vmatprep.subr.mxu0 0.0
    %577 = vmatpush1.msra.mxu0 0.0
    %578 = vmatprep.subr.mxu0 0.0
    %579 = vmatpush1.msra.mxu0 0.0
    %580 = vmatprep.subr.mxu0 0.0
    %581 = vmatpush1.msra.mxu0 0.0
    %582 = vmatprep.subr.mxu0 0.0
    %583 = vmatpush1.msra.mxu0 0.0
    %584 = vmatprep.subr.mxu0 0.0
    %585 = vmatpush1.msra.mxu0 0.0
    %586 = vmatprep.subr.mxu0 0.0
    %587 = vmatpush1.msra.mxu0 0.0
    %588 = vmatprep.subr.mxu0 0.0
    %589 = vmatpush1.msra.mxu0 0.0
    %590 = vmatprep.subr.mxu0 0.0
    %591 = vmatpush1.msra.mxu0 0.0
    %592 = vmatprep.subr.mxu0 0.0
    %593 = vmatpush1.msra.mxu0 0.0
    %594 = vmatprep.subr.mxu0 0.0
    %595 = vmatpush1.msra.mxu0 0.0
    %596 = vmatprep.subr.mxu0 0.0
    %597 = vmatpush1.msra.mxu0 0.0
    %598 = vmatprep.subr.mxu0 0.0
    %599 = vmatpush1.msra.mxu0 0.0
    %600 = vmatprep.subr.mxu0 0.0
    %601 = vmatpush1.msra.mxu0 0.0
    %602 = vmatprep.subr.mxu0 0.0
    %603 = vmatpush1.msra.mxu0 0.0
    %604 = vmatprep.subr.mxu0 0.0
    %605 = vmatpush1.msra.mxu0 0.0
    %606 = vmatprep.subr.mxu0 0.0
    %607 = vmatpush1.msra.mxu0 0.0
    %608 = vmatprep.subr.mxu0 0.0
    %609 = vmatpush1.msra.mxu0 0.0
    %610 = vmatprep.subr.mxu0 0.0
    %611 = vmatpush1.msra.mxu0 0.0
    %612 = vmatprep.subr.mxu0 0.0
    %613 = vmatpush1.msra.mxu0 0.0
    %614 = vmatprep.subr.mxu0 0.0
    %615 = vmatpush1.msra.mxu0 0.0
    %616 = vmatprep.subr.mxu0 0.0
    %617 = vmatpush1.msra.mxu0 0.0
    %618 = vmatprep.subr.mxu0 0.0
    %619 = vmatpush1.msra.mxu0 0.0
    %620 = vmatprep.subr.mxu0 0.0
    %621 = vmatpush1.msra.mxu0 0.0
    %622 = vmatprep.mubr.f32.mxu0 0.0
    %623 = vmatmul.mubr.f32.gmra.mrb[0].mxu0 %v553
    %v624 = vpop.f32.mrb[0].mxu0
    %v625 = vadd.f32 0.0, %v624
    %v626 = vpop.f32.mrb[0].mxu0
    %627 = vmatprep.mubr.f32.mxu0 0.0
    %628 = vmatmul.mubr.f32.gmra.mrb[0].mxu0 %v556
    %v629 = vpop.f32.mrb[0].mxu0
    %v630 = vadd.f32 0.0, %v629
    %v631 = vpop.f32.mrb[0].mxu0
    %632 = vdwg.mxu0
    %v633 = vmul.f32 %v625, %v542
    %v634 = vmul.f32 %v630, %v543
    %v635 = vpack.c.bf16 %v634, %v633
    %v636 = vld [vmem:[%s2 + $0x10] sm:$0xf]
    %v637 = vld [vmem:[%s2 + $0x14] sm:$0xf]
    %v638 = vld [vmem:[%s2 + $0x18] sm:$0xf]
    %v639 = vld [vmem:[%s2 + $0x1c] sm:$0xf]
    %v644 = vunpack.c.l.b16 %v636
    %v645 = vunpack.c.l.b16 %v637
    %v646 = vunpack.c.l.b16 %v638
    %v647 = vunpack.c.l.b16 %v639
    %v648 = vpack.c.b16 %v645, %v644
    %v649 = vpack.c.b16 %v647, %v646
    %v653 = vsel %vm143, %v635, 0
    %655 = vmatprep.subr.bf16.mxu0 0
    %656 = vmatpush1.bf16.msra.mxu0 %v648
    %657 = vmatprep.subr.bf16.mxu0 0
    %658 = vmatpush1.bf16.msra.mxu0 %v649
    %659 = vmatprep.subr.bf16.mxu0 0
    %660 = vmatpush1.bf16.msra.mxu0 0
    %661 = vmatprep.subr.bf16.mxu0 0
    %662 = vmatpush1.bf16.msra.mxu0 0
    %663 = vmatprep.subr.bf16.mxu0 0
    %664 = vmatpush1.bf16.msra.mxu0 0
    %665 = vmatprep.subr.bf16.mxu0 0
    %666 = vmatpush1.bf16.msra.mxu0 0
    %667 = vmatprep.subr.bf16.mxu0 0
    %668 = vmatpush1.bf16.msra.mxu0 0
    %669 = vmatprep.subr.bf16.mxu0 0
    %670 = vmatpush1.bf16.msra.mxu0 0
    %671 = vmatprep.subr.bf16.mxu0 0
    %672 = vmatpush1.bf16.msra.mxu0 0
    %673 = vmatprep.subr.bf16.mxu0 0
    %674 = vmatpush1.bf16.msra.mxu0 0
    %675 = vmatprep.subr.bf16.mxu0 0
    %676 = vmatpush1.bf16.msra.mxu0 0
    %677 = vmatprep.subr.bf16.mxu0 0
    %678 = vmatpush1.bf16.msra.mxu0 0
    %679 = vmatprep.subr.bf16.mxu0 0
    %680 = vmatpush1.bf16.msra.mxu0 0
    %681 = vmatprep.subr.bf16.mxu0 0
    %682 = vmatpush1.bf16.msra.mxu0 0
    %683 = vmatprep.subr.bf16.mxu0 0
    %684 = vmatpush1.bf16.msra.mxu0 0
    %685 = vmatprep.subr.bf16.mxu0 0
    %686 = vmatpush1.bf16.msra.mxu0 0
    %687 = vmatprep.mubr.bf16.mxu0 0
    %688 = vmatmul.mubr.bf16.gmra.mrb[0].mxu0 %v653
    %v689 = vpop.f32.mrb[0].mxu0
    %v690 = vadd.f32 0.0, %v689
    %v691 = vpop.f32.mrb[0].mxu0
    %v692 = vpop.f32.mrb[0].mxu0
    %v693 = vadd.f32 0.0, %v692
    %v694 = vpop.f32.mrb[0].mxu0
    %695 = vdwg.mxu0
    %v700 = vunpack.c.l.b16 %v382
    %v701 = vunpack.c.l.b16 %v383
    %v702 = vunpack.c.l.b16 %v384
    %v703 = vunpack.c.l.b16 %v385
    %v704 = vpack.c.b16 %v701, %v700
    %v705 = vpack.c.b16 %v703, %v702
    %v709 = vsel %vm143, %v381, 0
    %711 = vmatprep.subr.bf16.mxu0 0
    %712 = vmatpush1.bf16.msra.mxu0 %v704
    %713 = vmatprep.subr.bf16.mxu0 0
    %714 = vmatpush1.bf16.msra.mxu0 %v705
    %715 = vmatprep.subr.bf16.mxu0 0
    %716 = vmatpush1.bf16.msra.mxu0 0
    %717 = vmatprep.subr.bf16.mxu0 0
    %718 = vmatpush1.bf16.msra.mxu0 0
    %719 = vmatprep.subr.bf16.mxu0 0
    %720 = vmatpush1.bf16.msra.mxu0 0
    %721 = vmatprep.subr.bf16.mxu0 0
    %722 = vmatpush1.bf16.msra.mxu0 0
    %723 = vmatprep.subr.bf16.mxu0 0
    %724 = vmatpush1.bf16.msra.mxu0 0
    %725 = vmatprep.subr.bf16.mxu0 0
    %726 = vmatpush1.bf16.msra.mxu0 0
    %727 = vmatprep.subr.bf16.mxu0 0
    %728 = vmatpush1.bf16.msra.mxu0 0
    %729 = vmatprep.subr.bf16.mxu0 0
    %730 = vmatpush1.bf16.msra.mxu0 0
    %731 = vmatprep.subr.bf16.mxu0 0
    %732 = vmatpush1.bf16.msra.mxu0 0
    %733 = vmatprep.subr.bf16.mxu0 0
    %734 = vmatpush1.bf16.msra.mxu0 0
    %735 = vmatprep.subr.bf16.mxu0 0
    %736 = vmatpush1.bf16.msra.mxu0 0
    %737 = vmatprep.subr.bf16.mxu0 0
    %738 = vmatpush1.bf16.msra.mxu0 0
    %739 = vmatprep.subr.bf16.mxu0 0
    %740 = vmatpush1.bf16.msra.mxu0 0
    %741 = vmatprep.subr.bf16.mxu0 0
    %742 = vmatpush1.bf16.msra.mxu0 0
    %743 = vmatprep.mubr.bf16.mxu0 0
    %744 = vmatmul.mubr.bf16.gmra.mrb[0].mxu0 %v709
    %v745 = vpop.f32.mrb[0].mxu0
    %v746 = vadd.f32 %v690, %v745
    %v747 = vpop.f32.mrb[0].mxu0
    %v748 = vpop.f32.mrb[0].mxu0
    %v749 = vadd.f32 %v693, %v748
    %v750 = vpop.f32.mrb[0].mxu0
    %751 = vdwg.mxu0
    %752 = vst.msk [vmem:[#allocation2] sm:$0xff] %vm73, %v746
    %753 = vst.msk [vmem:[#allocation2 + $0x8] sm:$0xff] %vm73, %v749
    %v754 = vmul.f32 %v125, %v125
    %v755 = vmul.f32 %v129, %v129
    %v756 = vsel %vm143, %v754, 0.0
    %757 = vadd.xlane.f32.xlu0 %v756
    %v758 = vpop.xlane.xlu0 %757
    %v759 = vsel %vm143, %v755, 0.0
    %760 = vadd.xlane.f32.xlu0 %v759
    %v761 = vpop.xlane.xlu0 %760
    %v762 = vmax.f32 %v758, 1e-24
    %v763 = vmax.f32 %v761, 1e-24
    %v764 = vrsqrt.pop %v762
    %v765 = vrsqrt.pop %v763
    %v766 = vmul.f32 %v125, %v764
    %v767 = vmul.f32 %v129, %v765
    %770 = vrot.lane.b32.xlu0 %v754, 96
    %v771 = vpop.permute.xlu0 %770
    %772 = vrot.lane.b32.xlu0 %v755, 96
    %v773 = vpop.permute.xlu0 %772
    %v776 = vsel %vm143, %v771, 0.0
    %777 = vadd.xlane.f32.xlu0 %v776
    %v778 = vpop.xlane.xlu0 %777
    %v779 = vsel %vm143, %v773, 0.0
    %780 = vadd.xlane.f32.xlu0 %v779
    %v781 = vpop.xlane.xlu0 %780
    %v782 = vmax.f32 %v778, 1e-24
    %v783 = vmax.f32 %v781, 1e-24
    %v784 = vrsqrt.pop %v782
    %v785 = vrsqrt.pop %v783
    %v786 = vmul.f32 %v125, %v784
    %v787 = vmul.f32 %v129, %v785
    %v788 = vmul.f32 %v766, %v180
    %v789 = vmul.f32 %v767, %v180
    %792 = vrot.lane.b32.xlu0 %v786, 96
    %v793 = vpop.permute.xlu0 %792
    %794 = vrot.lane.b32.xlu0 %v787, 96
    %v795 = vpop.permute.xlu0 %794
    %v797 = vsel %vm143, %v788, 0
    %v800 = vsel %vm143, %v789, 0
    %v802 = vsel %vm143, %v793, 0
    %v804 = vsel %vm143, %v795, 0
    %806 = vmatprep.subr.mxu0 0.0
    %807 = vmatpush1.xpose.msra.mxu0 %v802
    %808 = vmatprep.subr.mxu0 0.0
    %809 = vmatpush1.xpose.msra.mxu0 %v804
    %810 = vmatprep.subr.mxu0 0.0
    %811 = vmatpush1.xpose.msra.mxu0 0.0
    %812 = vmatprep.subr.mxu0 0.0
    %813 = vmatpush1.xpose.msra.mxu0 0.0
    %814 = vmatprep.subr.mxu0 0.0
    %815 = vmatpush1.xpose.msra.mxu0 0.0
    %816 = vmatprep.subr.mxu0 0.0
    %817 = vmatpush1.xpose.msra.mxu0 0.0
    %818 = vmatprep.subr.mxu0 0.0
    %819 = vmatpush1.xpose.msra.mxu0 0.0
    %820 = vmatprep.subr.mxu0 0.0
    %821 = vmatpush1.xpose.msra.mxu0 0.0
    %822 = vmatprep.subr.mxu0 0.0
    %823 = vmatpush1.xpose.msra.mxu0 0.0
    %824 = vmatprep.subr.mxu0 0.0
    %825 = vmatpush1.xpose.msra.mxu0 0.0
    %826 = vmatprep.subr.mxu0 0.0
    %827 = vmatpush1.xpose.msra.mxu0 0.0
    %828 = vmatprep.subr.mxu0 0.0
    %829 = vmatpush1.xpose.msra.mxu0 0.0
    %830 = vmatprep.subr.mxu0 0.0
    %831 = vmatpush1.xpose.msra.mxu0 0.0
    %832 = vmatprep.subr.mxu0 0.0
    %833 = vmatpush1.xpose.msra.mxu0 0.0
    %834 = vmatprep.subr.mxu0 0.0
    %835 = vmatpush1.xpose.msra.mxu0 0.0
    %836 = vmatprep.subr.mxu0 0.0
    %837 = vmatpush1.xpose.msra.mxu0 0.0
    %838 = vmatprep.subr.mxu0 0.0
    %839 = vmatpush1.xpose.msra.mxu0 0.0
    %840 = vmatprep.subr.mxu0 0.0
    %841 = vmatpush1.xpose.msra.mxu0 0.0
    %842 = vmatprep.subr.mxu0 0.0
    %843 = vmatpush1.xpose.msra.mxu0 0.0
    %844 = vmatprep.subr.mxu0 0.0
    %845 = vmatpush1.xpose.msra.mxu0 0.0
    %846 = vmatprep.subr.mxu0 0.0
    %847 = vmatpush1.xpose.msra.mxu0 0.0
    %848 = vmatprep.subr.mxu0 0.0
    %849 = vmatpush1.xpose.msra.mxu0 0.0
    %850 = vmatprep.subr.mxu0 0.0
    %851 = vmatpush1.xpose.msra.mxu0 0.0
    %852 = vmatprep.subr.mxu0 0.0
    %853 = vmatpush1.xpose.msra.mxu0 0.0
    %854 = vmatprep.subr.mxu0 0.0
    %855 = vmatpush1.xpose.msra.mxu0 0.0
    %856 = vmatprep.subr.mxu0 0.0
    %857 = vmatpush1.xpose.msra.mxu0 0.0
    %858 = vmatprep.subr.mxu0 0.0
    %859 = vmatpush1.xpose.msra.mxu0 0.0
    %860 = vmatprep.subr.mxu0 0.0
    %861 = vmatpush1.xpose.msra.mxu0 0.0
    %862 = vmatprep.subr.mxu0 0.0
    %863 = vmatpush1.xpose.msra.mxu0 0.0
    %864 = vmatprep.subr.mxu0 0.0
    %865 = vmatpush1.xpose.msra.mxu0 0.0
    %866 = vmatprep.subr.mxu0 0.0
    %867 = vmatpush1.xpose.msra.mxu0 0.0
    %868 = vmatprep.subr.mxu0 0.0
    %869 = vmatpush1.xpose.msra.mxu0 0.0
    %870 = vmatprep.mubr.f32.mxu0 0.0
    %871 = vmatmul.mubr.f32.gmra.mrb[0].mxu0 %v797
    %v872 = vpop.f32.mrb[0].mxu0
    %v873 = vadd.f32 0.0, %v872
    %v874 = vpop.f32.mrb[0].mxu0
    %875 = vmatprep.mubr.f32.mxu0 0.0
    %876 = vmatmul.mubr.f32.gmra.mrb[0].mxu0 %v800
    %v877 = vpop.f32.mrb[0].mxu0
    %v878 = vadd.f32 0.0, %v877
    %v879 = vpop.f32.mrb[0].mxu0
    %880 = vdwg.mxu0
    %v881 = vsel %vm139, %v873, -1e+30
    %v882 = vsel %vm140, %v878, -1e+30
    %v883 = vsel %vm277, %v881, -inf
    %884 = vmax.xlane.f32.xlu0 %v883
    %v885 = vpop.xlane.xlu0 %884
    %v886 = vsel %vm277, %v882, -inf
    %887 = vmax.xlane.f32.xlu0 %v886
    %v888 = vpop.xlane.xlu0 %887
    %v889 = vsub.f32 %v881, %v885
    %v890 = vsub.f32 %v882, %v888
    %v891 = vmul.f32 %v889, 1.442695
    %v892 = vpow.pop %v891
    %v893 = vmul.f32 %v890, 1.442695
    %v894 = vpow.pop %v893
    %v895 = vsel %vm277, %v892, 0.0
    %896 = vadd.xlane.f32.xlu0 %v895
    %v897 = vpop.xlane.xlu0 %896
    %v898 = vsel %vm277, %v894, 0.0
    %899 = vadd.xlane.f32.xlu0 %v898
    %v900 = vpop.xlane.xlu0 %899
    %v901 = vrcp.pop %v897
    %v902 = vrcp.pop %v900
    %v904 = vsel %vm277, %v892, 0
    %v907 = vsel %vm277, %v894, 0
    %909 = vmatprep.subr.mxu0 0.0
    %910 = vmatpush1.msra.mxu0 %v127
    %911 = vmatprep.subr.mxu0 0.0
    %912 = vmatpush1.msra.mxu0 %v131
    %913 = vmatprep.subr.mxu0 0.0
    %914 = vmatpush1.msra.mxu0 0.0
    %915 = vmatprep.subr.mxu0 0.0
    %916 = vmatpush1.msra.mxu0 0.0
    %917 = vmatprep.subr.mxu0 0.0
    %918 = vmatpush1.msra.mxu0 0.0
    %919 = vmatprep.subr.mxu0 0.0
    %920 = vmatpush1.msra.mxu0 0.0
    %921 = vmatprep.subr.mxu0 0.0
    %922 = vmatpush1.msra.mxu0 0.0
    %923 = vmatprep.subr.mxu0 0.0
    %924 = vmatpush1.msra.mxu0 0.0
    %925 = vmatprep.subr.mxu0 0.0
    %926 = vmatpush1.msra.mxu0 0.0
    %927 = vmatprep.subr.mxu0 0.0
    %928 = vmatpush1.msra.mxu0 0.0
    %929 = vmatprep.subr.mxu0 0.0
    %930 = vmatpush1.msra.mxu0 0.0
    %931 = vmatprep.subr.mxu0 0.0
    %932 = vmatpush1.msra.mxu0 0.0
    %933 = vmatprep.subr.mxu0 0.0
    %934 = vmatpush1.msra.mxu0 0.0
    %935 = vmatprep.subr.mxu0 0.0
    %936 = vmatpush1.msra.mxu0 0.0
    %937 = vmatprep.subr.mxu0 0.0
    %938 = vmatpush1.msra.mxu0 0.0
    %939 = vmatprep.subr.mxu0 0.0
    %940 = vmatpush1.msra.mxu0 0.0
    %941 = vmatprep.subr.mxu0 0.0
    %942 = vmatpush1.msra.mxu0 0.0
    %943 = vmatprep.subr.mxu0 0.0
    %944 = vmatpush1.msra.mxu0 0.0
    %945 = vmatprep.subr.mxu0 0.0
    %946 = vmatpush1.msra.mxu0 0.0
    %947 = vmatprep.subr.mxu0 0.0
    %948 = vmatpush1.msra.mxu0 0.0
    %949 = vmatprep.subr.mxu0 0.0
    %950 = vmatpush1.msra.mxu0 0.0
    %951 = vmatprep.subr.mxu0 0.0
    %952 = vmatpush1.msra.mxu0 0.0
    %953 = vmatprep.subr.mxu0 0.0
    %954 = vmatpush1.msra.mxu0 0.0
    %955 = vmatprep.subr.mxu0 0.0
    %956 = vmatpush1.msra.mxu0 0.0
    %957 = vmatprep.subr.mxu0 0.0
    %958 = vmatpush1.msra.mxu0 0.0
    %959 = vmatprep.subr.mxu0 0.0
    %960 = vmatpush1.msra.mxu0 0.0
    %961 = vmatprep.subr.mxu0 0.0
    %962 = vmatpush1.msra.mxu0 0.0
    %963 = vmatprep.subr.mxu0 0.0
    %964 = vmatpush1.msra.mxu0 0.0
    %965 = vmatprep.subr.mxu0 0.0
    %966 = vmatpush1.msra.mxu0 0.0
    %967 = vmatprep.subr.mxu0 0.0
    %968 = vmatpush1.msra.mxu0 0.0
    %969 = vmatprep.subr.mxu0 0.0
    %970 = vmatpush1.msra.mxu0 0.0
    %971 = vmatprep.subr.mxu0 0.0
    %972 = vmatpush1.msra.mxu0 0.0
    %973 = vmatprep.mubr.f32.mxu0 0.0
    %974 = vmatmul.mubr.f32.gmra.mrb[0].mxu0 %v904
    %v975 = vpop.f32.mrb[0].mxu0
    %v976 = vadd.f32 0.0, %v975
    %v977 = vpop.f32.mrb[0].mxu0
    %978 = vmatprep.mubr.f32.mxu0 0.0
    %979 = vmatmul.mubr.f32.gmra.mrb[0].mxu0 %v907
    %v980 = vpop.f32.mrb[0].mxu0
    %v981 = vadd.f32 0.0, %v980
    %v982 = vpop.f32.mrb[0].mxu0
    %983 = vdwg.mxu0
    %v984 = vmul.f32 %v976, %v901
    %v985 = vmul.f32 %v981, %v902
    %v986 = vpack.c.bf16 %v985, %v984
    %v987 = vld [vmem:[%s2] sm:$0xf]
    %v988 = vld [vmem:[%s2 + $0x4] sm:$0xf]
    %v989 = vld [vmem:[%s2 + $0x8] sm:$0xf]
    %v990 = vld [vmem:[%s2 + $0xc] sm:$0xf]
    %991 = vrot.lane.b32.xlu0 %v754, 64
    %v992 = vpop.permute.xlu0 %991
    %993 = vrot.lane.b32.xlu0 %v755, 64
    %v994 = vpop.permute.xlu0 %993
    %v997 = vsel %vm143, %v992, 0.0
    %998 = vadd.xlane.f32.xlu0 %v997
    %v999 = vpop.xlane.xlu0 %998
    %v1000 = vsel %vm143, %v994, 0.0
    %1001 = vadd.xlane.f32.xlu0 %v1000
    %v1002 = vpop.xlane.xlu0 %1001
    %v1003 = vmax.f32 %v999, 1e-24
    %v1004 = vmax.f32 %v1002, 1e-24
    %v1005 = vrsqrt.pop %v1003
    %v1006 = vrsqrt.pop %v1004
    %v1007 = vmul.f32 %v125, %v1005
    %v1008 = vmul.f32 %v129, %v1006
    %1009 = vrot.lane.b32.xlu0 %v754, 32
    %v1010 = vpop.permute.xlu0 %1009
    %1011 = vrot.lane.b32.xlu0 %v755, 32
    %v1012 = vpop.permute.xlu0 %1011
    %v1015 = vsel %vm143, %v1010, 0.0
    %1016 = vadd.xlane.f32.xlu0 %v1015
    %v1017 = vpop.xlane.xlu0 %1016
    %v1018 = vsel %vm143, %v1012, 0.0
    %1019 = vadd.xlane.f32.xlu0 %v1018
    %v1020 = vpop.xlane.xlu0 %1019
    %v1021 = vmax.f32 %v1017, 1e-24
    %v1022 = vmax.f32 %v1020, 1e-24
    %v1023 = vrsqrt.pop %v1021
    %v1024 = vrsqrt.pop %v1022
    %v1025 = vmul.f32 %v125, %v1023
    %v1026 = vmul.f32 %v129, %v1024
    %v1027 = vmul.f32 %v1007, %v423
    %v1028 = vmul.f32 %v1008, %v423
    %1031 = vrot.lane.b32.xlu0 %v1027, 64
    %v1032 = vpop.permute.xlu0 %1031
    %1033 = vrot.lane.b32.xlu0 %v1028, 64
    %v1034 = vpop.permute.xlu0 %1033
    %1037 = vrot.lane.b32.xlu0 %v1025, 32
    %v1038 = vpop.permute.xlu0 %1037
    %1039 = vrot.lane.b32.xlu0 %v1026, 32
    %v1040 = vpop.permute.xlu0 %1039
    %v1041 = vsel %vm143, %v1032, 0
    %v1043 = vsel %vm143, %v1034, 0
    %v1045 = vsel %vm143, %v1038, 0
    %v1047 = vsel %vm143, %v1040, 0
    %1049 = vmatprep.subr.mxu0 0.0
    %1050 = vmatpush1.xpose.msra.mxu0 %v1045
    %1051 = vmatprep.subr.mxu0 0.0
    %1052 = vmatpush1.xpose.msra.mxu0 %v1047
    %1053 = vmatprep.subr.mxu0 0.0
    %1054 = vmatpush1.xpose.msra.mxu0 0.0
    %1055 = vmatprep.subr.mxu0 0.0
    %1056 = vmatpush1.xpose.msra.mxu0 0.0
    %1057 = vmatprep.subr.mxu0 0.0
    %1058 = vmatpush1.xpose.msra.mxu0 0.0
    %1059 = vmatprep.subr.mxu0 0.0
    %1060 = vmatpush1.xpose.msra.mxu0 0.0
    %1061 = vmatprep.subr.mxu0 0.0
    %1062 = vmatpush1.xpose.msra.mxu0 0.0
    %1063 = vmatprep.subr.mxu0 0.0
    %1064 = vmatpush1.xpose.msra.mxu0 0.0
    %1065 = vmatprep.subr.mxu0 0.0
    %1066 = vmatpush1.xpose.msra.mxu0 0.0
    %1067 = vmatprep.subr.mxu0 0.0
    %1068 = vmatpush1.xpose.msra.mxu0 0.0
    %1069 = vmatprep.subr.mxu0 0.0
    %1070 = vmatpush1.xpose.msra.mxu0 0.0
    %1071 = vmatprep.subr.mxu0 0.0
    %1072 = vmatpush1.xpose.msra.mxu0 0.0
    %1073 = vmatprep.subr.mxu0 0.0
    %1074 = vmatpush1.xpose.msra.mxu0 0.0
    %1075 = vmatprep.subr.mxu0 0.0
    %1076 = vmatpush1.xpose.msra.mxu0 0.0
    %1077 = vmatprep.subr.mxu0 0.0
    %1078 = vmatpush1.xpose.msra.mxu0 0.0
    %1079 = vmatprep.subr.mxu0 0.0
    %1080 = vmatpush1.xpose.msra.mxu0 0.0
    %1081 = vmatprep.subr.mxu0 0.0
    %1082 = vmatpush1.xpose.msra.mxu0 0.0
    %1083 = vmatprep.subr.mxu0 0.0
    %1084 = vmatpush1.xpose.msra.mxu0 0.0
    %1085 = vmatprep.subr.mxu0 0.0
    %1086 = vmatpush1.xpose.msra.mxu0 0.0
    %1087 = vmatprep.subr.mxu0 0.0
    %1088 = vmatpush1.xpose.msra.mxu0 0.0
    %1089 = vmatprep.subr.mxu0 0.0
    %1090 = vmatpush1.xpose.msra.mxu0 0.0
    %1091 = vmatprep.subr.mxu0 0.0
    %1092 = vmatpush1.xpose.msra.mxu0 0.0
    %1093 = vmatprep.subr.mxu0 0.0
    %1094 = vmatpush1.xpose.msra.mxu0 0.0
    %1095 = vmatprep.subr.mxu0 0.0
    %1096 = vmatpush1.xpose.msra.mxu0 0.0
    %1097 = vmatprep.subr.mxu0 0.0
    %1098 = vmatpush1.xpose.msra.mxu0 0.0
    %1099 = vmatprep.subr.mxu0 0.0
    %1100 = vmatpush1.xpose.msra.mxu0 0.0
    %1101 = vmatprep.subr.mxu0 0.0
    %1102 = vmatpush1.xpose.msra.mxu0 0.0
    %1103 = vmatprep.subr.mxu0 0.0
    %1104 = vmatpush1.xpose.msra.mxu0 0.0
    %1105 = vmatprep.subr.mxu0 0.0
    %1106 = vmatpush1.xpose.msra.mxu0 0.0
    %1107 = vmatprep.subr.mxu0 0.0
    %1108 = vmatpush1.xpose.msra.mxu0 0.0
    %1109 = vmatprep.subr.mxu0 0.0
    %1110 = vmatpush1.xpose.msra.mxu0 0.0
    %1111 = vmatprep.subr.mxu0 0.0
    %1112 = vmatpush1.xpose.msra.mxu0 0.0
    %1113 = vmatprep.mubr.f32.mxu0 0.0
    %1114 = vmatmul.mubr.f32.gmra.mrb[0].mxu0 %v1041
    %v1115 = vpop.f32.mrb[0].mxu0
    %v1116 = vadd.f32 0.0, %v1115
    %v1117 = vpop.f32.mrb[0].mxu0
    %1118 = vmatprep.mubr.f32.mxu0 0.0
    %1119 = vmatmul.mubr.f32.gmra.mrb[0].mxu0 %v1043
    %v1120 = vpop.f32.mrb[0].mxu0
    %v1121 = vadd.f32 0.0, %v1120
    %v1122 = vpop.f32.mrb[0].mxu0
    %1123 = vdwg.mxu0
    %v1124 = vsel %vm139, %v1116, -1e+30
    %v1125 = vsel %vm140, %v1121, -1e+30
    %v1126 = vsel %vm277, %v1124, -inf
    %1127 = vmax.xlane.f32.xlu0 %v1126
    %v1128 = vpop.xlane.xlu0 %1127
    %v1129 = vsel %vm277, %v1125, -inf
    %1130 = vmax.xlane.f32.xlu0 %v1129
    %v1131 = vpop.xlane.xlu0 %1130
    %v1132 = vsub.f32 %v1124, %v1128
    %v1133 = vsub.f32 %v1125, %v1131
    %v1134 = vmul.f32 %v1132, 1.442695
    %v1135 = vpow.pop %v1134
    %v1136 = vmul.f32 %v1133, 1.442695
    %v1137 = vpow.pop %v1136
    %v1138 = vsel %vm277, %v1135, 0.0
    %1139 = vadd.xlane.f32.xlu0 %v1138
    %v1140 = vpop.xlane.xlu0 %1139
    %v1141 = vsel %vm277, %v1137, 0.0
    %1142 = vadd.xlane.f32.xlu0 %v1141
    %v1143 = vpop.xlane.xlu0 %1142
    %v1144 = vrcp.pop %v1140
    %v1145 = vrcp.pop %v1143
    %1148 = vrot.lane.b32.xlu0 %v127, 96
    %v1149 = vpop.permute.xlu0 %1148
    %1150 = vrot.lane.b32.xlu0 %v131, 96
    %v1151 = vpop.permute.xlu0 %1150
    %v1155 = vsel %vm277, %v1135, 0
    %v1158 = vsel %vm277, %v1137, 0
    %1160 = vmatprep.subr.mxu0 0.0
    %1161 = vmatpush1.msra.mxu0 %v1149
    %1162 = vmatprep.subr.mxu0 0.0
    %1163 = vmatpush1.msra.mxu0 %v1151
    %1164 = vmatprep.subr.mxu0 0.0
    %1165 = vmatpush1.msra.mxu0 0.0
    %1166 = vmatprep.subr.mxu0 0.0
    %1167 = vmatpush1.msra.mxu0 0.0
    %1168 = vmatprep.subr.mxu0 0.0
    %1169 = vmatpush1.msra.mxu0 0.0
    %1170 = vmatprep.subr.mxu0 0.0
    %1171 = vmatpush1.msra.mxu0 0.0
    %1172 = vmatprep.subr.mxu0 0.0
    %1173 = vmatpush1.msra.mxu0 0.0
    %1174 = vmatprep.subr.mxu0 0.0
    %1175 = vmatpush1.msra.mxu0 0.0
    %1176 = vmatprep.subr.mxu0 0.0
    %1177 = vmatpush1.msra.mxu0 0.0
    %1178 = vmatprep.subr.mxu0 0.0
    %1179 = vmatpush1.msra.mxu0 0.0
    %1180 = vmatprep.subr.mxu0 0.0
    %1181 = vmatpush1.msra.mxu0 0.0
    %1182 = vmatprep.subr.mxu0 0.0
    %1183 = vmatpush1.msra.mxu0 0.0
    %1184 = vmatprep.subr.mxu0 0.0
    %1185 = vmatpush1.msra.mxu0 0.0
    %1186 = vmatprep.subr.mxu0 0.0
    %1187 = vmatpush1.msra.mxu0 0.0
    %1188 = vmatprep.subr.mxu0 0.0
    %1189 = vmatpush1.msra.mxu0 0.0
    %1190 = vmatprep.subr.mxu0 0.0
    %1191 = vmatpush1.msra.mxu0 0.0
    %1192 = vmatprep.subr.mxu0 0.0
    %1193 = vmatpush1.msra.mxu0 0.0
    %1194 = vmatprep.subr.mxu0 0.0
    %1195 = vmatpush1.msra.mxu0 0.0
    %1196 = vmatprep.subr.mxu0 0.0
    %1197 = vmatpush1.msra.mxu0 0.0
    %1198 = vmatprep.subr.mxu0 0.0
    %1199 = vmatpush1.msra.mxu0 0.0
    %1200 = vmatprep.subr.mxu0 0.0
    %1201 = vmatpush1.msra.mxu0 0.0
    %1202 = vmatprep.subr.mxu0 0.0
    %1203 = vmatpush1.msra.mxu0 0.0
    %1204 = vmatprep.subr.mxu0 0.0
    %1205 = vmatpush1.msra.mxu0 0.0
    %1206 = vmatprep.subr.mxu0 0.0
    %1207 = vmatpush1.msra.mxu0 0.0
    %1208 = vmatprep.subr.mxu0 0.0
    %1209 = vmatpush1.msra.mxu0 0.0
    %1210 = vmatprep.subr.mxu0 0.0
    %1211 = vmatpush1.msra.mxu0 0.0
    %1212 = vmatprep.subr.mxu0 0.0
    %1213 = vmatpush1.msra.mxu0 0.0
    %1214 = vmatprep.subr.mxu0 0.0
    %1215 = vmatpush1.msra.mxu0 0.0
    %1216 = vmatprep.subr.mxu0 0.0
    %1217 = vmatpush1.msra.mxu0 0.0
    %1218 = vmatprep.subr.mxu0 0.0
    %1219 = vmatpush1.msra.mxu0 0.0
    %1220 = vmatprep.subr.mxu0 0.0
    %1221 = vmatpush1.msra.mxu0 0.0
    %1222 = vmatprep.subr.mxu0 0.0
    %1223 = vmatpush1.msra.mxu0 0.0
    %1224 = vmatprep.mubr.f32.mxu0 0.0
    %1225 = vmatmul.mubr.f32.gmra.mrb[0].mxu0 %v1155
    %v1226 = vpop.f32.mrb[0].mxu0
    %v1227 = vadd.f32 0.0, %v1226
    %v1228 = vpop.f32.mrb[0].mxu0
    %1229 = vmatprep.mubr.f32.mxu0 0.0
    %1230 = vmatmul.mubr.f32.gmra.mrb[0].mxu0 %v1158
    %v1231 = vpop.f32.mrb[0].mxu0
    %v1232 = vadd.f32 0.0, %v1231
    %v1233 = vpop.f32.mrb[0].mxu0
    %1234 = vdwg.mxu0
    %v1235 = vmul.f32 %v1227, %v1144
    %v1236 = vmul.f32 %v1232, %v1145
    %v1237 = vpack.c.bf16 %v1236, %v1235
    %v1238 = vld [vmem:[%s2 + $0x10] sm:$0xf]
    %v1239 = vld [vmem:[%s2 + $0x14] sm:$0xf]
    %v1240 = vld [vmem:[%s2 + $0x18] sm:$0xf]
    %v1241 = vld [vmem:[%s2 + $0x1c] sm:$0xf]
    %v1246 = vunpack.c.l.b16 %v1238
    %v1247 = vunpack.c.l.b16 %v1239
    %v1248 = vunpack.c.l.b16 %v1240
    %v1249 = vunpack.c.l.b16 %v1241
    %v1250 = vpack.c.b16 %v1247, %v1246
    %v1251 = vpack.c.b16 %v1249, %v1248
    %v1255 = vsel %vm143, %v1237, 0
    %1257 = vmatprep.subr.bf16.mxu0 0
    %1258 = vmatpush1.bf16.msra.mxu0 %v1250
    %1259 = vmatprep.subr.bf16.mxu0 0
    %1260 = vmatpush1.bf16.msra.mxu0 %v1251
    %1261 = vmatprep.subr.bf16.mxu0 0
    %1262 = vmatpush1.bf16.msra.mxu0 0
    %1263 = vmatprep.subr.bf16.mxu0 0
    %1264 = vmatpush1.bf16.msra.mxu0 0
    %1265 = vmatprep.subr.bf16.mxu0 0
    %1266 = vmatpush1.bf16.msra.mxu0 0
    %1267 = vmatprep.subr.bf16.mxu0 0
    %1268 = vmatpush1.bf16.msra.mxu0 0
    %1269 = vmatprep.subr.bf16.mxu0 0
    %1270 = vmatpush1.bf16.msra.mxu0 0
    %1271 = vmatprep.subr.bf16.mxu0 0
    %1272 = vmatpush1.bf16.msra.mxu0 0
    %1273 = vmatprep.subr.bf16.mxu0 0
    %1274 = vmatpush1.bf16.msra.mxu0 0
    %1275 = vmatprep.subr.bf16.mxu0 0
    %1276 = vmatpush1.bf16.msra.mxu0 0
    %1277 = vmatprep.subr.bf16.mxu0 0
    %1278 = vmatpush1.bf16.msra.mxu0 0
    %1279 = vmatprep.subr.bf16.mxu0 0
    %1280 = vmatpush1.bf16.msra.mxu0 0
    %1281 = vmatprep.subr.bf16.mxu0 0
    %1282 = vmatpush1.bf16.msra.mxu0 0
    %1283 = vmatprep.subr.bf16.mxu0 0
    %1284 = vmatpush1.bf16.msra.mxu0 0
    %1285 = vmatprep.subr.bf16.mxu0 0
    %1286 = vmatpush1.bf16.msra.mxu0 0
    %1287 = vmatprep.subr.bf16.mxu0 0
    %1288 = vmatpush1.bf16.msra.mxu0 0
    %1289 = vmatprep.mubr.bf16.mxu0 0
    %1290 = vmatmul.mubr.bf16.gmra.mrb[0].mxu0 %v1255
    %v1291 = vpop.f32.mrb[0].mxu0
    %v1292 = vadd.f32 0.0, %v1291
    %v1293 = vpop.f32.mrb[0].mxu0
    %v1294 = vpop.f32.mrb[0].mxu0
    %v1295 = vadd.f32 0.0, %v1294
    %v1296 = vpop.f32.mrb[0].mxu0
    %1297 = vdwg.mxu0
    %v1302 = vunpack.c.l.b16 %v987
    %v1303 = vunpack.c.l.b16 %v988
    %v1304 = vunpack.c.l.b16 %v989
    %v1305 = vunpack.c.l.b16 %v990
    %v1306 = vpack.c.b16 %v1303, %v1302
    %v1307 = vpack.c.b16 %v1305, %v1304
    %v1311 = vsel %vm143, %v986, 0
    %1313 = vmatprep.subr.bf16.mxu0 0
    %1314 = vmatpush1.bf16.msra.mxu0 %v1306
    %1315 = vmatprep.subr.bf16.mxu0 0
    %1316 = vmatpush1.bf16.msra.mxu0 %v1307
    %1317 = vmatprep.subr.bf16.mxu0 0
    %1318 = vmatpush1.bf16.msra.mxu0 0
    %1319 = vmatprep.subr.bf16.mxu0 0
    %1320 = vmatpush1.bf16.msra.mxu0 0
    %1321 = vmatprep.subr.bf16.mxu0 0
    %1322 = vmatpush1.bf16.msra.mxu0 0
    %1323 = vmatprep.subr.bf16.mxu0 0
    %1324 = vmatpush1.bf16.msra.mxu0 0
    %1325 = vmatprep.subr.bf16.mxu0 0
    %1326 = vmatpush1.bf16.msra.mxu0 0
    %1327 = vmatprep.subr.bf16.mxu0 0
    %1328 = vmatpush1.bf16.msra.mxu0 0
    %1329 = vmatprep.subr.bf16.mxu0 0
    %1330 = vmatpush1.bf16.msra.mxu0 0
    %1331 = vmatprep.subr.bf16.mxu0 0
    %1332 = vmatpush1.bf16.msra.mxu0 0
    %1333 = vmatprep.subr.bf16.mxu0 0
    %1334 = vmatpush1.bf16.msra.mxu0 0
    %1335 = vmatprep.subr.bf16.mxu0 0
    %1336 = vmatpush1.bf16.msra.mxu0 0
    %1337 = vmatprep.subr.bf16.mxu0 0
    %1338 = vmatpush1.bf16.msra.mxu0 0
    %1339 = vmatprep.subr.bf16.mxu0 0
    %1340 = vmatpush1.bf16.msra.mxu0 0
    %1341 = vmatprep.subr.bf16.mxu0 0
    %1342 = vmatpush1.bf16.msra.mxu0 0
    %1343 = vmatprep.subr.bf16.mxu0 0
    %1344 = vmatpush1.bf16.msra.mxu0 0
    %1345 = vmatprep.mubr.bf16.mxu0 0
    %1346 = vmatmul.mubr.bf16.gmra.mrb[0].mxu0 %v1311
    %v1347 = vpop.f32.mrb[0].mxu0
    %v1348 = vadd.f32 %v1292, %v1347
    %v1349 = vpop.f32.mrb[0].mxu0
    %v1350 = vpop.f32.mrb[0].mxu0
    %v1351 = vadd.f32 %v1295, %v1350
    %v1352 = vpop.f32.mrb[0].mxu0
    %1353 = vdwg.mxu0
    %1354 = vst.msk [vmem:[#allocation2 + $0x10] sm:$0xff] %vm73, %v1348
    %1355 = vst.msk [vmem:[#allocation2 + $0x18] sm:$0xff] %vm73, %v1351
    // Predicated region
    $region18: #{attention_forward.1} parent=1 // pred_check
      _
    $region19: #{attention_forward.1} parent=1 // pred_check_branch
      %1357 = sbr.rel (0) target = $region21
    $region20: #{attention_forward.1} parent=1 // pred_region
      %s1359 = ssub.s32 512, 512
      %1360 = vsyncadd [#allocation3], %s1359
      %s1361 = sshll.u32 [#allocation2], 4
      %s1362 = int_to_ptr.vmem [resolvable:$true] %s1361
      %1367 = dma.vmem_to_hbm [thread:$0]  %s1362, 512, %s4, [#allocation3], 128, 128, 8
    $region21: #{attention_forward.1} parent=1 // pred_fallthru
      _
    // Predicated region
    $region22: #{attention_forward.1} parent=1 // pred_check
      _
    $region23: #{attention_forward.1} parent=1 // pred_check_branch
      %1369 = sbr.rel (0) target = $region25
    $region24: #{attention_forward.1} parent=1 // pred_region
      %1370 = dma.done [#allocation3], 512
    $region25: #{attention_forward.1} parent=1 // pred_fallthru
      _
    %1371 = vsyncpa [#allocation3], 1

</llo_original>
